<compile_context>
chip_gen: v6e
topology: v6e:2x2x1
jax: 0.10.0
libtpu: 0.0.40
codegen_flags: <defaults>
</compile_context>

<pallas_src>
import functools

import jax
import jax.numpy as jnp
from jax import lax
from jax.experimental import pallas as pl
from jax.experimental.pallas import tpu as pltpu

# ---------------------------------------------------------------------------
# problem sizes (small, consistent with the module's forward)
# ---------------------------------------------------------------------------
B = 2          # batch_size
S = 8          # seq length (self-attention: target == source)
E = 32         # attention_dim
H = 4          # num_heads
DH = E // H    # head dim
LN_EPS = 1e-5


def _layer_norm(z, gamma, beta):
    mu = jnp.mean(z, axis=-1, keepdims=True)
    var = jnp.mean((z - mu) ** 2, axis=-1, keepdims=True)
    return (z - mu) * lax.rsqrt(var + LN_EPS) * gamma + beta


def transformer_encoder_kernel(
    x_ref, mask_ref,
    wqkv_ref, bqkv_ref, wo_ref, bo_ref,
    g1_ref, be1_ref,
    w1_ref, b1_ref, w2_ref, b2_ref,
    g2_ref, be2_ref,
    o_ref,
    *, bb,
):
    """One grid step processes `bb` batch elements, laid out as (bb*S, E) rows."""
    x = x_ref[...]                                    # (bb*S, E)

    # ---- fused QKV in-projection: one MXU push instead of three ----
    qkv = jnp.dot(x, wqkv_ref[...], preferred_element_type=jnp.float32) + bqkv_ref[...]

    scale = 1.0 / (DH ** 0.5)

    attn_rows = []
    for b in range(bb):                               # static unroll over the batch block
        r0 = b * S
        qkv_b = qkv[r0:r0 + S, :]                     # (S, 3E), sublane-aligned slice
        bias = mask_ref[b]                            # (1, S) additive mask bias

        acc = jnp.zeros((S, E), jnp.float32)
        for h in range(H):                            # static unroll over heads
            lo = h * DH
            qh = qkv_b[:, lo:lo + DH]                 # (S, DH)
            kh = qkv_b[:, E + lo:E + lo + DH]
            vh = qkv_b[:, 2 * E + lo:2 * E + lo + DH]
            # contract on the head dim of both operands: no kh.T materialized
            scores = lax.dot_general(
                qh, kh, (((1,), (1,)), ((), ())),
                preferred_element_type=jnp.float32) * scale
            scores = scores + bias                    # key_padding_mask as additive bias
            m = jnp.max(scores, axis=-1, keepdims=True)
            p = jnp.exp(scores - m)
            p = p * pl.reciprocal(jnp.sum(p, axis=-1, keepdims=True), approx=True)
            ctx = jnp.dot(p, vh, preferred_element_type=jnp.float32)     # (S, DH)
            # accumulate straight into the out-projection: wo row block is
            # sublane-aligned (DH == 8); avoids lane-axis head concatenation.
            acc = acc + jnp.dot(ctx, wo_ref[lo:lo + DH, :],
                                preferred_element_type=jnp.float32)
        attn_rows.append(acc)

    attn = attn_rows[0] if bb == 1 else jnp.concatenate(attn_rows, axis=0)
    attn = attn + bo_ref[...]

    # ---- residual + LayerNorm 1 (all rows of the block at once) ----
    out1 = _layer_norm(x + attn, g1_ref[...], be1_ref[...])

    # ---- feed-forward ----
    hid = jnp.dot(out1, w1_ref[...], preferred_element_type=jnp.float32) + b1_ref[...]
    hid = jnp.maximum(hid, 0.0)
    ff = jnp.dot(hid, w2_ref[...], preferred_element_type=jnp.float32) + b2_ref[...]

    # ---- residual + LayerNorm 2 ----
    o_ref[...] = _layer_norm(out1 + ff, g2_ref[...], be2_ref[...])


def _batch_block_size(batch_size: int) -> int:
    """v7x has 2 TensorCores/chip: keep a parallel per-batch grid axis so both get
    work.  Single-TC chips (v5e/v6e): fold the whole batch into one grid step to
    remove per-step overhead on what is a purely serial grid."""
    kind = ""
    try:
        kind = jax.devices()[0].device_kind.lower()
    except Exception:
        pass
    if "v7" in kind:
        return 1
    return batch_size


def transformer_encoder(inputs_query, neighbor_masks, params):
    """inputs_query: (B, S, E) f32; neighbor_masks: (B, S) f32 (0 => masked key)."""
    Bq, Sq, Eq = inputs_query.shape

    (wq, bq, wk, bk, wv, bv, wo, bo,
     g1, be1, w1, b1, w2, b2, g2, be2) = params

    # fuse the three in-projections once, outside the kernel (pure layout prep)
    wqkv = jnp.concatenate([wq, wk, wv], axis=1)       # (E, 3E)
    bqkv = jnp.concatenate([bq, bk, bv], axis=1)       # (1, 3E)

    # key_padding_mask == (neighbor_masks == 0); masked keys get -1e9 before softmax
    mask_bias = jnp.where(neighbor_masks == 0, -1e9, 0.0).astype(jnp.float32)
    mask_bias = mask_bias.reshape(Bq, 1, Sq)

    bb = _batch_block_size(Bq)                         # batch elements per grid step
    num_blocks = Bq // bb
    rows = bb * Sq

    x2 = inputs_query.reshape(Bq * Sq, Eq)             # lane-dense (rows, E) layout

    def whole2d(a):
        return pl.BlockSpec(a.shape, lambda i: (0, 0))

    out = pl.pallas_call(
        functools.partial(transformer_encoder_kernel, bb=bb),
        out_shape=jax.ShapeDtypeStruct((Bq * Sq, Eq), jnp.float32),
        grid_spec=pltpu.PrefetchScalarGridSpec(
            num_scalar_prefetch=0,
            grid=(num_blocks,),
            in_specs=[
                pl.BlockSpec((rows, Eq), lambda i: (i, 0)),       # input rows
                pl.BlockSpec((bb, 1, Sq), lambda i: (i, 0, 0)),   # mask bias
                whole2d(wqkv), whole2d(bqkv), whole2d(wo), whole2d(bo),
                whole2d(g1), whole2d(be1),
                whole2d(w1), whole2d(b1), whole2d(w2), whole2d(b2),
                whole2d(g2), whole2d(be2),
            ],
            out_specs=pl.BlockSpec((rows, Eq), lambda i: (i, 0)),
        ),
        compiler_params=pltpu.CompilerParams(
            dimension_semantics=("parallel",)),
    )(x2, mask_bias,
      wqkv, bqkv, wo, bo,
      g1, be1, w1, b1, w2, b2, g2, be2)
    return out.reshape(Bq, Sq, Eq)


def make_params(key):
    """Deterministic synthetic parameters mirroring the PyTorch module shapes.

    nn.MultiheadAttention: in_proj_weight (3E, E), in_proj_bias (3E,),
    out_proj (E, E) + (E,).  We pre-split/transpose so the kernel does x @ W.
    """
    ks = jax.random.split(key, 8)
    s = 0.05
    wq = jax.random.normal(ks[0], (E, E), jnp.float32) * s
    wk = jax.random.normal(ks[1], (E, E), jnp.float32) * s
    wv = jax.random.normal(ks[2], (E, E), jnp.float32) * s
    wo = jax.random.normal(ks[3], (E, E), jnp.float32) * s
    bq = jnp.zeros((1, E), jnp.float32) + 0.01
    bk = jnp.zeros((1, E), jnp.float32) - 0.01
    bv = jnp.zeros((1, E), jnp.float32) + 0.02
    bo = jnp.zeros((1, E), jnp.float32)
    # LayerNorms
    g1 = jnp.ones((1, E), jnp.float32)
    be1 = jnp.zeros((1, E), jnp.float32)
    g2 = jnp.ones((1, E), jnp.float32)
    be2 = jnp.zeros((1, E), jnp.float32)
    # FFN: Linear(E, 4E), Linear(4E, E) — stored already transposed for x @ W
    w1 = jax.random.normal(ks[4], (E, 4 * E), jnp.float32) * s
    b1 = jnp.zeros((1, 4 * E), jnp.float32) + 0.01
    w2 = jax.random.normal(ks[5], (4 * E, E), jnp.float32) * s
    b2 = jnp.zeros((1, E), jnp.float32) - 0.01
    return (wq, bq, wk, bk, wv, bv, wo, bo, g1, be1, w1, b1, w2, b2, g2, be2)


def reference(inputs_query, neighbor_masks, params):
    """Pure-JAX reference replicating the PyTorch forward (eval mode)."""
    (wq, bq, wk, bk, wv, bv, wo, bo, g1, be1, w1, b1, w2, b2, g2, be2) = params
    x = inputs_query
    qp = x @ wq + bq
    kp = x @ wk + bk
    vp = x @ wv + bv

    def split_heads(t):
        return t.reshape(B, S, H, DH).transpose(0, 2, 1, 3)   # (B,H,S,DH)

    qh, kh, vh = split_heads(qp), split_heads(kp), split_heads(vp)
    scores = jnp.einsum("bhqd,bhkd->bhqk", qh, kh) / (DH ** 0.5)
    bias = jnp.where(neighbor_masks == 0, -1e9, 0.0)[:, None, None, :]
    scores = scores + bias
    attn = jax.nn.softmax(scores, axis=-1)
    ctx = jnp.einsum("bhqk,bhkd->bhqd", attn, vh)
    ctx = ctx.transpose(0, 2, 1, 3).reshape(B, S, E)
    attn_out = ctx @ wo + bo

    def ln(z, g, bb_):
        mu = jnp.mean(z, -1, keepdims=True)
        var = jnp.mean((z - mu) ** 2, -1, keepdims=True)
        return (z - mu) / jnp.sqrt(var + LN_EPS) * g + bb_

    out1 = ln(x + attn_out, g1, be1)
    hid = jnp.maximum(out1 @ w1 + b1, 0.0)
    ff = hid @ w2 + b2
    return ln(out1 + ff, g2, be2)


if __name__ == "__main__":
    key = jax.random.PRNGKey(0)
    k_x, k_m, k_p = jax.random.split(key, 3)

    inputs_query = jax.random.normal(k_x, (B, S, E), jnp.float32)
    # neighbor_masks: nonzero => valid key, 0 => masked; keep at least one valid
    neighbor_masks = (jax.random.uniform(k_m, (B, S)) > 0.3).astype(jnp.float32)
    neighbor_masks = neighbor_masks.at[:, 0].set(1.0)

    params = make_params(k_p)

    out = transformer_encoder(inputs_query, neighbor_masks, params)
    out = jax.block_until_ready(out)

    ref = reference(inputs_query, neighbor_masks, params)
    assert out.shape == (B, S, E)
    # slightly looser than 1e-3 to accommodate the EUP approx reciprocal in softmax
    assert jnp.allclose(out, ref, rtol=2e-3, atol=2e-3), "mismatch vs JAX reference"

    print("KERNEL_OK")
</pallas_src>

<mosaic_0001>
module attributes {stable_mosaic.version = 11 : i64} {
  func.func @transformer_encoder_kernel(%arg0: i32, %arg1: memref<16x32xf32, #tpu.memory_space<vmem>>, %arg2: memref<2x1x8xf32, #tpu.memory_space<vmem>>, %arg3: memref<32x96xf32, #tpu.memory_space<vmem>>, %arg4: memref<1x96xf32, #tpu.memory_space<vmem>>, %arg5: memref<32x32xf32, #tpu.memory_space<vmem>>, %arg6: memref<1x32xf32, #tpu.memory_space<vmem>>, %arg7: memref<1x32xf32, #tpu.memory_space<vmem>>, %arg8: memref<1x32xf32, #tpu.memory_space<vmem>>, %arg9: memref<32x128xf32, #tpu.memory_space<vmem>>, %arg10: memref<1x128xf32, #tpu.memory_space<vmem>>, %arg11: memref<128x32xf32, #tpu.memory_space<vmem>>, %arg12: memref<1x32xf32, #tpu.memory_space<vmem>>, %arg13: memref<1x32xf32, #tpu.memory_space<vmem>>, %arg14: memref<1x32xf32, #tpu.memory_space<vmem>>, %arg15: memref<16x32xf32, #tpu.memory_space<vmem>>) attributes {dimension_semantics = [#tpu.dimension_semantics<parallel>], iteration_bounds = array<i64: 1>, scalar_prefetch = 0 : i64, scratch_operands = 0 : i64, tpu.core_type = #tpu.core_type<tc>, window_params = [{transform_indices = @transform_0, window_bounds = array<i64: 16, 32>}, {transform_indices = @transform_1, window_bounds = array<i64: 2, 1, 8>}, {pipeline_mode = #tpu.pipeline_mode<synchronous>, transform_indices = @transform_2, window_bounds = array<i64: 32, 96>}, {pipeline_mode = #tpu.pipeline_mode<synchronous>, transform_indices = @transform_3, window_bounds = array<i64: 1, 96>}, {pipeline_mode = #tpu.pipeline_mode<synchronous>, transform_indices = @transform_4, window_bounds = array<i64: 32, 32>}, {pipeline_mode = #tpu.pipeline_mode<synchronous>, transform_indices = @transform_5, window_bounds = array<i64: 1, 32>}, {pipeline_mode = #tpu.pipeline_mode<synchronous>, transform_indices = @transform_6, window_bounds = array<i64: 1, 32>}, {pipeline_mode = #tpu.pipeline_mode<synchronous>, transform_indices = @transform_7, window_bounds = array<i64: 1, 32>}, {pipeline_mode = #tpu.pipeline_mode<synchronous>, transform_indices = @transform_8, window_bounds = array<i64: 32, 128>}, {pipeline_mode = #tpu.pipeline_mode<synchronous>, transform_indices = @transform_9, window_bounds = array<i64: 1, 128>}, {pipeline_mode = #tpu.pipeline_mode<synchronous>, transform_indices = @transform_10, window_bounds = array<i64: 128, 32>}, {pipeline_mode = #tpu.pipeline_mode<synchronous>, transform_indices = @transform_11, window_bounds = array<i64: 1, 32>}, {pipeline_mode = #tpu.pipeline_mode<synchronous>, transform_indices = @transform_12, window_bounds = array<i64: 1, 32>}, {pipeline_mode = #tpu.pipeline_mode<synchronous>, transform_indices = @transform_13, window_bounds = array<i64: 1, 32>}, {transform_indices = @transform_14, window_bounds = array<i64: 16, 32>}]} {
    %c0 = arith.constant 0 : index
    %c0_0 = arith.constant 0 : index
    %0 = vector.load %arg1[%c0, %c0_0] : memref<16x32xf32, #tpu.memory_space<vmem>>, vector<16x32xf32>
    %c0_1 = arith.constant 0 : index
    %c0_2 = arith.constant 0 : index
    %1 = vector.load %arg3[%c0_1, %c0_2] : memref<32x96xf32, #tpu.memory_space<vmem>>, vector<32x96xf32>
    %cst = arith.constant dense<0.000000e+00> : vector<16x96xf32>
    %2 = tpu.matmul %0, %1, %cst {dimension_numbers = #tpu.dot_dimension_numbers<[1], [0], [0], [1], [0, 0, 1, 1], [], []>} : vector<16x32xf32>, vector<32x96xf32>, vector<16x96xf32> -> vector<16x96xf32>
    %c0_3 = arith.constant 0 : index
    %c0_4 = arith.constant 0 : index
    %3 = vector.load %arg4[%c0_3, %c0_4] : memref<1x96xf32, #tpu.memory_space<vmem>>, vector<1x96xf32>
    %4 = vector.broadcast %3 : vector<1x96xf32> to vector<16x96xf32>
    %5 = arith.addf %2, %4 : vector<16x96xf32>
    %6 = vector.extract_strided_slice %5 {offsets = [0, 0], sizes = [8, 96], strides = [1, 1]} : vector<16x96xf32> to vector<8x96xf32>
    %c0_5 = arith.constant 0 : index
    %c0_6 = arith.constant 0 : index
    %c0_7 = arith.constant 0 : index
    %7 = vector.load %arg2[%c0_5, %c0_6, %c0_7] : memref<2x1x8xf32, #tpu.memory_space<vmem>>, vector<1x1x8xf32>
    %8 = vector.shape_cast %7 : vector<1x1x8xf32> to vector<1x8xf32>
    %cst_8 = arith.constant 0.000000e+00 : f32
    %9 = vector.broadcast %cst_8 : f32 to vector<8x32xf32>
    %10 = vector.extract_strided_slice %6 {offsets = [0, 0], sizes = [8, 8], strides = [1, 1]} : vector<8x96xf32> to vector<8x8xf32>
    %11 = vector.extract_strided_slice %6 {offsets = [0, 32], sizes = [8, 8], strides = [1, 1]} : vector<8x96xf32> to vector<8x8xf32>
    %12 = vector.extract_strided_slice %6 {offsets = [0, 64], sizes = [8, 8], strides = [1, 1]} : vector<8x96xf32> to vector<8x8xf32>
    %cst_9 = arith.constant dense<0.000000e+00> : vector<8x8xf32>
    %13 = tpu.matmul %10, %11, %cst_9 {dimension_numbers = #tpu.dot_dimension_numbers<[1], [1], [0], [0], [0, 0, 1, 0], [], []>} : vector<8x8xf32>, vector<8x8xf32>, vector<8x8xf32> -> vector<8x8xf32>
    %cst_10 = arith.constant 0.353553385 : f32
    %14 = vector.broadcast %cst_10 : f32 to vector<8x8xf32>
    %15 = arith.mulf %13, %14 : vector<8x8xf32>
    %16 = vector.broadcast %8 : vector<1x8xf32> to vector<8x8xf32>
    %17 = arith.addf %15, %16 : vector<8x8xf32>
    %cst_11 = arith.constant dense<0xFF800000> : vector<8xf32>
    %18 = vector.multi_reduction <maximumf>, %17, %cst_11 [1] : vector<8x8xf32> to vector<8xf32>
    %19 = vector.shape_cast %18 : vector<8xf32> to vector<8x1xf32>
    %20 = vector.broadcast %19 : vector<8x1xf32> to vector<8x8xf32>
    %21 = arith.subf %17, %20 : vector<8x8xf32>
    %22 = math.exp %21 : vector<8x8xf32>
    %cst_12 = arith.constant dense<0.000000e+00> : vector<8xf32>
    %23 = vector.multi_reduction <add>, %22, %cst_12 [1] : vector<8x8xf32> to vector<8xf32>
    %24 = vector.shape_cast %23 : vector<8xf32> to vector<8x1xf32>
    %25 = tpu.reciprocal %24 {approx = true} : vector<8x1xf32> -> vector<8x1xf32>
    %26 = vector.broadcast %25 : vector<8x1xf32> to vector<8x8xf32>
    %27 = arith.mulf %22, %26 : vector<8x8xf32>
    %cst_13 = arith.constant dense<0.000000e+00> : vector<8x8xf32>
    %28 = tpu.matmul %27, %12, %cst_13 {dimension_numbers = #tpu.dot_dimension_numbers<[1], [0], [0], [1], [0, 0, 1, 1], [], []>} : vector<8x8xf32>, vector<8x8xf32>, vector<8x8xf32> -> vector<8x8xf32>
    %c0_14 = arith.constant 0 : index
    %c0_15 = arith.constant 0 : index
    %29 = vector.load %arg5[%c0_14, %c0_15] : memref<32x32xf32, #tpu.memory_space<vmem>>, vector<8x32xf32>
    %cst_16 = arith.constant dense<0.000000e+00> : vector<8x32xf32>
    %30 = tpu.matmul %28, %29, %cst_16 {dimension_numbers = #tpu.dot_dimension_numbers<[1], [0], [0], [1], [0, 0, 1, 1], [], []>} : vector<8x8xf32>, vector<8x32xf32>, vector<8x32xf32> -> vector<8x32xf32>
    %31 = arith.addf %9, %30 : vector<8x32xf32>
    %32 = vector.extract_strided_slice %6 {offsets = [0, 8], sizes = [8, 8], strides = [1, 1]} : vector<8x96xf32> to vector<8x8xf32>
    %33 = vector.extract_strided_slice %6 {offsets = [0, 40], sizes = [8, 8], strides = [1, 1]} : vector<8x96xf32> to vector<8x8xf32>
    %34 = vector.extract_strided_slice %6 {offsets = [0, 72], sizes = [8, 8], strides = [1, 1]} : vector<8x96xf32> to vector<8x8xf32>
    %cst_17 = arith.constant dense<0.000000e+00> : vector<8x8xf32>
    %35 = tpu.matmul %32, %33, %cst_17 {dimension_numbers = #tpu.dot_dimension_numbers<[1], [1], [0], [0], [0, 0, 1, 0], [], []>} : vector<8x8xf32>, vector<8x8xf32>, vector<8x8xf32> -> vector<8x8xf32>
    %cst_18 = arith.constant 0.353553385 : f32
    %36 = vector.broadcast %cst_18 : f32 to vector<8x8xf32>
    %37 = arith.mulf %35, %36 : vector<8x8xf32>
    %38 = vector.broadcast %8 : vector<1x8xf32> to vector<8x8xf32>
    %39 = arith.addf %37, %38 : vector<8x8xf32>
    %cst_19 = arith.constant dense<0xFF800000> : vector<8xf32>
    %40 = vector.multi_reduction <maximumf>, %39, %cst_19 [1] : vector<8x8xf32> to vector<8xf32>
    %41 = vector.shape_cast %40 : vector<8xf32> to vector<8x1xf32>
    %42 = vector.broadcast %41 : vector<8x1xf32> to vector<8x8xf32>
    %43 = arith.subf %39, %42 : vector<8x8xf32>
    %44 = math.exp %43 : vector<8x8xf32>
    %cst_20 = arith.constant dense<0.000000e+00> : vector<8xf32>
    %45 = vector.multi_reduction <add>, %44, %cst_20 [1] : vector<8x8xf32> to vector<8xf32>
    %46 = vector.shape_cast %45 : vector<8xf32> to vector<8x1xf32>
    %47 = tpu.reciprocal %46 {approx = true} : vector<8x1xf32> -> vector<8x1xf32>
    %48 = vector.broadcast %47 : vector<8x1xf32> to vector<8x8xf32>
    %49 = arith.mulf %44, %48 : vector<8x8xf32>
    %cst_21 = arith.constant dense<0.000000e+00> : vector<8x8xf32>
    %50 = tpu.matmul %49, %34, %cst_21 {dimension_numbers = #tpu.dot_dimension_numbers<[1], [0], [0], [1], [0, 0, 1, 1], [], []>} : vector<8x8xf32>, vector<8x8xf32>, vector<8x8xf32> -> vector<8x8xf32>
    %c8 = arith.constant 8 : index
    %c0_22 = arith.constant 0 : index
    %51 = vector.load %arg5[%c8, %c0_22] : memref<32x32xf32, #tpu.memory_space<vmem>>, vector<8x32xf32>
    %cst_23 = arith.constant dense<0.000000e+00> : vector<8x32xf32>
    %52 = tpu.matmul %50, %51, %cst_23 {dimension_numbers = #tpu.dot_dimension_numbers<[1], [0], [0], [1], [0, 0, 1, 1], [], []>} : vector<8x8xf32>, vector<8x32xf32>, vector<8x32xf32> -> vector<8x32xf32>
    %53 = arith.addf %31, %52 : vector<8x32xf32>
    %54 = vector.extract_strided_slice %6 {offsets = [0, 16], sizes = [8, 8], strides = [1, 1]} : vector<8x96xf32> to vector<8x8xf32>
    %55 = vector.extract_strided_slice %6 {offsets = [0, 48], sizes = [8, 8], strides = [1, 1]} : vector<8x96xf32> to vector<8x8xf32>
    %56 = vector.extract_strided_slice %6 {offsets = [0, 80], sizes = [8, 8], strides = [1, 1]} : vector<8x96xf32> to vector<8x8xf32>
    %cst_24 = arith.constant dense<0.000000e+00> : vector<8x8xf32>
    %57 = tpu.matmul %54, %55, %cst_24 {dimension_numbers = #tpu.dot_dimension_numbers<[1], [1], [0], [0], [0, 0, 1, 0], [], []>} : vector<8x8xf32>, vector<8x8xf32>, vector<8x8xf32> -> vector<8x8xf32>
    %cst_25 = arith.constant 0.353553385 : f32
    %58 = vector.broadcast %cst_25 : f32 to vector<8x8xf32>
    %59 = arith.mulf %57, %58 : vector<8x8xf32>
    %60 = vector.broadcast %8 : vector<1x8xf32> to vector<8x8xf32>
    %61 = arith.addf %59, %60 : vector<8x8xf32>
    %cst_26 = arith.constant dense<0xFF800000> : vector<8xf32>
    %62 = vector.multi_reduction <maximumf>, %61, %cst_26 [1] : vector<8x8xf32> to vector<8xf32>
    %63 = vector.shape_cast %62 : vector<8xf32> to vector<8x1xf32>
    %64 = vector.broadcast %63 : vector<8x1xf32> to vector<8x8xf32>
    %65 = arith.subf %61, %64 : vector<8x8xf32>
    %66 = math.exp %65 : vector<8x8xf32>
    %cst_27 = arith.constant dense<0.000000e+00> : vector<8xf32>
    %67 = vector.multi_reduction <add>, %66, %cst_27 [1] : vector<8x8xf32> to vector<8xf32>
    %68 = vector.shape_cast %67 : vector<8xf32> to vector<8x1xf32>
    %69 = tpu.reciprocal %68 {approx = true} : vector<8x1xf32> -> vector<8x1xf32>
    %70 = vector.broadcast %69 : vector<8x1xf32> to vector<8x8xf32>
    %71 = arith.mulf %66, %70 : vector<8x8xf32>
    %cst_28 = arith.constant dense<0.000000e+00> : vector<8x8xf32>
    %72 = tpu.matmul %71, %56, %cst_28 {dimension_numbers = #tpu.dot_dimension_numbers<[1], [0], [0], [1], [0, 0, 1, 1], [], []>} : vector<8x8xf32>, vector<8x8xf32>, vector<8x8xf32> -> vector<8x8xf32>
    %c16 = arith.constant 16 : index
    %c0_29 = arith.constant 0 : index
    %73 = vector.load %arg5[%c16, %c0_29] : memref<32x32xf32, #tpu.memory_space<vmem>>, vector<8x32xf32>
    %cst_30 = arith.constant dense<0.000000e+00> : vector<8x32xf32>
    %74 = tpu.matmul %72, %73, %cst_30 {dimension_numbers = #tpu.dot_dimension_numbers<[1], [0], [0], [1], [0, 0, 1, 1], [], []>} : vector<8x8xf32>, vector<8x32xf32>, vector<8x32xf32> -> vector<8x32xf32>
    %75 = arith.addf %53, %74 : vector<8x32xf32>
    %76 = vector.extract_strided_slice %6 {offsets = [0, 24], sizes = [8, 8], strides = [1, 1]} : vector<8x96xf32> to vector<8x8xf32>
    %77 = vector.extract_strided_slice %6 {offsets = [0, 56], sizes = [8, 8], strides = [1, 1]} : vector<8x96xf32> to vector<8x8xf32>
    %78 = vector.extract_strided_slice %6 {offsets = [0, 88], sizes = [8, 8], strides = [1, 1]} : vector<8x96xf32> to vector<8x8xf32>
    %cst_31 = arith.constant dense<0.000000e+00> : vector<8x8xf32>
    %79 = tpu.matmul %76, %77, %cst_31 {dimension_numbers = #tpu.dot_dimension_numbers<[1], [1], [0], [0], [0, 0, 1, 0], [], []>} : vector<8x8xf32>, vector<8x8xf32>, vector<8x8xf32> -> vector<8x8xf32>
    %cst_32 = arith.constant 0.353553385 : f32
    %80 = vector.broadcast %cst_32 : f32 to vector<8x8xf32>
    %81 = arith.mulf %79, %80 : vector<8x8xf32>
    %82 = vector.broadcast %8 : vector<1x8xf32> to vector<8x8xf32>
    %83 = arith.addf %81, %82 : vector<8x8xf32>
    %cst_33 = arith.constant dense<0xFF800000> : vector<8xf32>
    %84 = vector.multi_reduction <maximumf>, %83, %cst_33 [1] : vector<8x8xf32> to vector<8xf32>
    %85 = vector.shape_cast %84 : vector<8xf32> to vector<8x1xf32>
    %86 = vector.broadcast %85 : vector<8x1xf32> to vector<8x8xf32>
    %87 = arith.subf %83, %86 : vector<8x8xf32>
    %88 = math.exp %87 : vector<8x8xf32>
    %cst_34 = arith.constant dense<0.000000e+00> : vector<8xf32>
    %89 = vector.multi_reduction <add>, %88, %cst_34 [1] : vector<8x8xf32> to vector<8xf32>
    %90 = vector.shape_cast %89 : vector<8xf32> to vector<8x1xf32>
    %91 = tpu.reciprocal %90 {approx = true} : vector<8x1xf32> -> vector<8x1xf32>
    %92 = vector.broadcast %91 : vector<8x1xf32> to vector<8x8xf32>
    %93 = arith.mulf %88, %92 : vector<8x8xf32>
    %cst_35 = arith.constant dense<0.000000e+00> : vector<8x8xf32>
    %94 = tpu.matmul %93, %78, %cst_35 {dimension_numbers = #tpu.dot_dimension_numbers<[1], [0], [0], [1], [0, 0, 1, 1], [], []>} : vector<8x8xf32>, vector<8x8xf32>, vector<8x8xf32> -> vector<8x8xf32>
    %c24 = arith.constant 24 : index
    %c0_36 = arith.constant 0 : index
    %95 = vector.load %arg5[%c24, %c0_36] : memref<32x32xf32, #tpu.memory_space<vmem>>, vector<8x32xf32>
    %cst_37 = arith.constant dense<0.000000e+00> : vector<8x32xf32>
    %96 = tpu.matmul %94, %95, %cst_37 {dimension_numbers = #tpu.dot_dimension_numbers<[1], [0], [0], [1], [0, 0, 1, 1], [], []>} : vector<8x8xf32>, vector<8x32xf32>, vector<8x32xf32> -> vector<8x32xf32>
    %97 = arith.addf %75, %96 : vector<8x32xf32>
    %98 = vector.extract_strided_slice %5 {offsets = [8, 0], sizes = [8, 96], strides = [1, 1]} : vector<16x96xf32> to vector<8x96xf32>
    %c1 = arith.constant 1 : index
    %c0_38 = arith.constant 0 : index
    %c0_39 = arith.constant 0 : index
    %99 = vector.load %arg2[%c1, %c0_38, %c0_39] : memref<2x1x8xf32, #tpu.memory_space<vmem>>, vector<1x1x8xf32>
    %100 = vector.shape_cast %99 : vector<1x1x8xf32> to vector<1x8xf32>
    %cst_40 = arith.constant 0.000000e+00 : f32
    %101 = vector.broadcast %cst_40 : f32 to vector<8x32xf32>
    %102 = vector.extract_strided_slice %98 {offsets = [0, 0], sizes = [8, 8], strides = [1, 1]} : vector<8x96xf32> to vector<8x8xf32>
    %103 = vector.extract_strided_slice %98 {offsets = [0, 32], sizes = [8, 8], strides = [1, 1]} : vector<8x96xf32> to vector<8x8xf32>
    %104 = vector.extract_strided_slice %98 {offsets = [0, 64], sizes = [8, 8], strides = [1, 1]} : vector<8x96xf32> to vector<8x8xf32>
    %cst_41 = arith.constant dense<0.000000e+00> : vector<8x8xf32>
    %105 = tpu.matmul %102, %103, %cst_41 {dimension_numbers = #tpu.dot_dimension_numbers<[1], [1], [0], [0], [0, 0, 1, 0], [], []>} : vector<8x8xf32>, vector<8x8xf32>, vector<8x8xf32> -> vector<8x8xf32>
    %cst_42 = arith.constant 0.353553385 : f32
    %106 = vector.broadcast %cst_42 : f32 to vector<8x8xf32>
    %107 = arith.mulf %105, %106 : vector<8x8xf32>
    %108 = vector.broadcast %100 : vector<1x8xf32> to vector<8x8xf32>
    %109 = arith.addf %107, %108 : vector<8x8xf32>
    %cst_43 = arith.constant dense<0xFF800000> : vector<8xf32>
    %110 = vector.multi_reduction <maximumf>, %109, %cst_43 [1] : vector<8x8xf32> to vector<8xf32>
    %111 = vector.shape_cast %110 : vector<8xf32> to vector<8x1xf32>
    %112 = vector.broadcast %111 : vector<8x1xf32> to vector<8x8xf32>
    %113 = arith.subf %109, %112 : vector<8x8xf32>
    %114 = math.exp %113 : vector<8x8xf32>
    %cst_44 = arith.constant dense<0.000000e+00> : vector<8xf32>
    %115 = vector.multi_reduction <add>, %114, %cst_44 [1] : vector<8x8xf32> to vector<8xf32>
    %116 = vector.shape_cast %115 : vector<8xf32> to vector<8x1xf32>
    %117 = tpu.reciprocal %116 {approx = true} : vector<8x1xf32> -> vector<8x1xf32>
    %118 = vector.broadcast %117 : vector<8x1xf32> to vector<8x8xf32>
    %119 = arith.mulf %114, %118 : vector<8x8xf32>
    %cst_45 = arith.constant dense<0.000000e+00> : vector<8x8xf32>
    %120 = tpu.matmul %119, %104, %cst_45 {dimension_numbers = #tpu.dot_dimension_numbers<[1], [0], [0], [1], [0, 0, 1, 1], [], []>} : vector<8x8xf32>, vector<8x8xf32>, vector<8x8xf32> -> vector<8x8xf32>
    %c0_46 = arith.constant 0 : index
    %c0_47 = arith.constant 0 : index
    %121 = vector.load %arg5[%c0_46, %c0_47] : memref<32x32xf32, #tpu.memory_space<vmem>>, vector<8x32xf32>
    %cst_48 = arith.constant dense<0.000000e+00> : vector<8x32xf32>
    %122 = tpu.matmul %120, %121, %cst_48 {dimension_numbers = #tpu.dot_dimension_numbers<[1], [0], [0], [1], [0, 0, 1, 1], [], []>} : vector<8x8xf32>, vector<8x32xf32>, vector<8x32xf32> -> vector<8x32xf32>
    %123 = arith.addf %101, %122 : vector<8x32xf32>
    %124 = vector.extract_strided_slice %98 {offsets = [0, 8], sizes = [8, 8], strides = [1, 1]} : vector<8x96xf32> to vector<8x8xf32>
    %125 = vector.extract_strided_slice %98 {offsets = [0, 40], sizes = [8, 8], strides = [1, 1]} : vector<8x96xf32> to vector<8x8xf32>
    %126 = vector.extract_strided_slice %98 {offsets = [0, 72], sizes = [8, 8], strides = [1, 1]} : vector<8x96xf32> to vector<8x8xf32>
    %cst_49 = arith.constant dense<0.000000e+00> : vector<8x8xf32>
    %127 = tpu.matmul %124, %125, %cst_49 {dimension_numbers = #tpu.dot_dimension_numbers<[1], [1], [0], [0], [0, 0, 1, 0], [], []>} : vector<8x8xf32>, vector<8x8xf32>, vector<8x8xf32> -> vector<8x8xf32>
    %cst_50 = arith.constant 0.353553385 : f32
    %128 = vector.broadcast %cst_50 : f32 to vector<8x8xf32>
    %129 = arith.mulf %127, %128 : vector<8x8xf32>
    %130 = vector.broadcast %100 : vector<1x8xf32> to vector<8x8xf32>
    %131 = arith.addf %129, %130 : vector<8x8xf32>
    %cst_51 = arith.constant dense<0xFF800000> : vector<8xf32>
    %132 = vector.multi_reduction <maximumf>, %131, %cst_51 [1] : vector<8x8xf32> to vector<8xf32>
    %133 = vector.shape_cast %132 : vector<8xf32> to vector<8x1xf32>
    %134 = vector.broadcast %133 : vector<8x1xf32> to vector<8x8xf32>
    %135 = arith.subf %131, %134 : vector<8x8xf32>
    %136 = math.exp %135 : vector<8x8xf32>
    %cst_52 = arith.constant dense<0.000000e+00> : vector<8xf32>
    %137 = vector.multi_reduction <add>, %136, %cst_52 [1] : vector<8x8xf32> to vector<8xf32>
    %138 = vector.shape_cast %137 : vector<8xf32> to vector<8x1xf32>
    %139 = tpu.reciprocal %138 {approx = true} : vector<8x1xf32> -> vector<8x1xf32>
    %140 = vector.broadcast %139 : vector<8x1xf32> to vector<8x8xf32>
    %141 = arith.mulf %136, %140 : vector<8x8xf32>
    %cst_53 = arith.constant dense<0.000000e+00> : vector<8x8xf32>
    %142 = tpu.matmul %141, %126, %cst_53 {dimension_numbers = #tpu.dot_dimension_numbers<[1], [0], [0], [1], [0, 0, 1, 1], [], []>} : vector<8x8xf32>, vector<8x8xf32>, vector<8x8xf32> -> vector<8x8xf32>
    %c8_54 = arith.constant 8 : index
    %c0_55 = arith.constant 0 : index
    %143 = vector.load %arg5[%c8_54, %c0_55] : memref<32x32xf32, #tpu.memory_space<vmem>>, vector<8x32xf32>
    %cst_56 = arith.constant dense<0.000000e+00> : vector<8x32xf32>
    %144 = tpu.matmul %142, %143, %cst_56 {dimension_numbers = #tpu.dot_dimension_numbers<[1], [0], [0], [1], [0, 0, 1, 1], [], []>} : vector<8x8xf32>, vector<8x32xf32>, vector<8x32xf32> -> vector<8x32xf32>
    %145 = arith.addf %123, %144 : vector<8x32xf32>
    %146 = vector.extract_strided_slice %98 {offsets = [0, 16], sizes = [8, 8], strides = [1, 1]} : vector<8x96xf32> to vector<8x8xf32>
    %147 = vector.extract_strided_slice %98 {offsets = [0, 48], sizes = [8, 8], strides = [1, 1]} : vector<8x96xf32> to vector<8x8xf32>
    %148 = vector.extract_strided_slice %98 {offsets = [0, 80], sizes = [8, 8], strides = [1, 1]} : vector<8x96xf32> to vector<8x8xf32>
    %cst_57 = arith.constant dense<0.000000e+00> : vector<8x8xf32>
    %149 = tpu.matmul %146, %147, %cst_57 {dimension_numbers = #tpu.dot_dimension_numbers<[1], [1], [0], [0], [0, 0, 1, 0], [], []>} : vector<8x8xf32>, vector<8x8xf32>, vector<8x8xf32> -> vector<8x8xf32>
    %cst_58 = arith.constant 0.353553385 : f32
    %150 = vector.broadcast %cst_58 : f32 to vector<8x8xf32>
    %151 = arith.mulf %149, %150 : vector<8x8xf32>
    %152 = vector.broadcast %100 : vector<1x8xf32> to vector<8x8xf32>
    %153 = arith.addf %151, %152 : vector<8x8xf32>
    %cst_59 = arith.constant dense<0xFF800000> : vector<8xf32>
    %154 = vector.multi_reduction <maximumf>, %153, %cst_59 [1] : vector<8x8xf32> to vector<8xf32>
    %155 = vector.shape_cast %154 : vector<8xf32> to vector<8x1xf32>
    %156 = vector.broadcast %155 : vector<8x1xf32> to vector<8x8xf32>
    %157 = arith.subf %153, %156 : vector<8x8xf32>
    %158 = math.exp %157 : vector<8x8xf32>
    %cst_60 = arith.constant dense<0.000000e+00> : vector<8xf32>
    %159 = vector.multi_reduction <add>, %158, %cst_60 [1] : vector<8x8xf32> to vector<8xf32>
    %160 = vector.shape_cast %159 : vector<8xf32> to vector<8x1xf32>
    %161 = tpu.reciprocal %160 {approx = true} : vector<8x1xf32> -> vector<8x1xf32>
    %162 = vector.broadcast %161 : vector<8x1xf32> to vector<8x8xf32>
    %163 = arith.mulf %158, %162 : vector<8x8xf32>
    %cst_61 = arith.constant dense<0.000000e+00> : vector<8x8xf32>
    %164 = tpu.matmul %163, %148, %cst_61 {dimension_numbers = #tpu.dot_dimension_numbers<[1], [0], [0], [1], [0, 0, 1, 1], [], []>} : vector<8x8xf32>, vector<8x8xf32>, vector<8x8xf32> -> vector<8x8xf32>
    %c16_62 = arith.constant 16 : index
    %c0_63 = arith.constant 0 : index
    %165 = vector.load %arg5[%c16_62, %c0_63] : memref<32x32xf32, #tpu.memory_space<vmem>>, vector<8x32xf32>
    %cst_64 = arith.constant dense<0.000000e+00> : vector<8x32xf32>
    %166 = tpu.matmul %164, %165, %cst_64 {dimension_numbers = #tpu.dot_dimension_numbers<[1], [0], [0], [1], [0, 0, 1, 1], [], []>} : vector<8x8xf32>, vector<8x32xf32>, vector<8x32xf32> -> vector<8x32xf32>
    %167 = arith.addf %145, %166 : vector<8x32xf32>
    %168 = vector.extract_strided_slice %98 {offsets = [0, 24], sizes = [8, 8], strides = [1, 1]} : vector<8x96xf32> to vector<8x8xf32>
    %169 = vector.extract_strided_slice %98 {offsets = [0, 56], sizes = [8, 8], strides = [1, 1]} : vector<8x96xf32> to vector<8x8xf32>
    %170 = vector.extract_strided_slice %98 {offsets = [0, 88], sizes = [8, 8], strides = [1, 1]} : vector<8x96xf32> to vector<8x8xf32>
    %cst_65 = arith.constant dense<0.000000e+00> : vector<8x8xf32>
    %171 = tpu.matmul %168, %169, %cst_65 {dimension_numbers = #tpu.dot_dimension_numbers<[1], [1], [0], [0], [0, 0, 1, 0], [], []>} : vector<8x8xf32>, vector<8x8xf32>, vector<8x8xf32> -> vector<8x8xf32>
    %cst_66 = arith.constant 0.353553385 : f32
    %172 = vector.broadcast %cst_66 : f32 to vector<8x8xf32>
    %173 = arith.mulf %171, %172 : vector<8x8xf32>
    %174 = vector.broadcast %100 : vector<1x8xf32> to vector<8x8xf32>
    %175 = arith.addf %173, %174 : vector<8x8xf32>
    %cst_67 = arith.constant dense<0xFF800000> : vector<8xf32>
    %176 = vector.multi_reduction <maximumf>, %175, %cst_67 [1] : vector<8x8xf32> to vector<8xf32>
    %177 = vector.shape_cast %176 : vector<8xf32> to vector<8x1xf32>
    %178 = vector.broadcast %177 : vector<8x1xf32> to vector<8x8xf32>
    %179 = arith.subf %175, %178 : vector<8x8xf32>
    %180 = math.exp %179 : vector<8x8xf32>
    %cst_68 = arith.constant dense<0.000000e+00> : vector<8xf32>
    %181 = vector.multi_reduction <add>, %180, %cst_68 [1] : vector<8x8xf32> to vector<8xf32>
    %182 = vector.shape_cast %181 : vector<8xf32> to vector<8x1xf32>
    %183 = tpu.reciprocal %182 {approx = true} : vector<8x1xf32> -> vector<8x1xf32>
    %184 = vector.broadcast %183 : vector<8x1xf32> to vector<8x8xf32>
    %185 = arith.mulf %180, %184 : vector<8x8xf32>
    %cst_69 = arith.constant dense<0.000000e+00> : vector<8x8xf32>
    %186 = tpu.matmul %185, %170, %cst_69 {dimension_numbers = #tpu.dot_dimension_numbers<[1], [0], [0], [1], [0, 0, 1, 1], [], []>} : vector<8x8xf32>, vector<8x8xf32>, vector<8x8xf32> -> vector<8x8xf32>
    %c24_70 = arith.constant 24 : index
    %c0_71 = arith.constant 0 : index
    %187 = vector.load %arg5[%c24_70, %c0_71] : memref<32x32xf32, #tpu.memory_space<vmem>>, vector<8x32xf32>
    %cst_72 = arith.constant dense<0.000000e+00> : vector<8x32xf32>
    %188 = tpu.matmul %186, %187, %cst_72 {dimension_numbers = #tpu.dot_dimension_numbers<[1], [0], [0], [1], [0, 0, 1, 1], [], []>} : vector<8x8xf32>, vector<8x32xf32>, vector<8x32xf32> -> vector<8x32xf32>
    %189 = arith.addf %167, %188 : vector<8x32xf32>
    %190 = tpu.concatenate %97, %189 in 0 : vector<8x32xf32>, vector<8x32xf32> -> vector<16x32xf32>
    %c0_73 = arith.constant 0 : index
    %c0_74 = arith.constant 0 : index
    %191 = vector.load %arg6[%c0_73, %c0_74] : memref<1x32xf32, #tpu.memory_space<vmem>>, vector<1x32xf32>
    %192 = vector.broadcast %191 : vector<1x32xf32> to vector<16x32xf32>
    %193 = arith.addf %190, %192 : vector<16x32xf32>
    %194 = arith.addf %0, %193 : vector<16x32xf32>
    %c0_75 = arith.constant 0 : index
    %c0_76 = arith.constant 0 : index
    %195 = vector.load %arg7[%c0_75, %c0_76] : memref<1x32xf32, #tpu.memory_space<vmem>>, vector<1x32xf32>
    %c0_77 = arith.constant 0 : index
    %c0_78 = arith.constant 0 : index
    %196 = vector.load %arg8[%c0_77, %c0_78] : memref<1x32xf32, #tpu.memory_space<vmem>>, vector<1x32xf32>
    %cst_79 = arith.constant dense<0.000000e+00> : vector<16xf32>
    %197 = vector.multi_reduction <add>, %194, %cst_79 [1] : vector<16x32xf32> to vector<16xf32>
    %198 = vector.shape_cast %197 : vector<16xf32> to vector<16x1xf32>
    %cst_80 = arith.constant 3.200000e+01 : f32
    %199 = vector.broadcast %cst_80 : f32 to vector<16x1xf32>
    %200 = arith.divf %198, %199 : vector<16x1xf32>
    %201 = vector.broadcast %200 : vector<16x1xf32> to vector<16x32xf32>
    %202 = arith.subf %194, %201 : vector<16x32xf32>
    %203 = arith.mulf %202, %202 : vector<16x32xf32>
    %cst_81 = arith.constant dense<0.000000e+00> : vector<16xf32>
    %204 = vector.multi_reduction <add>, %203, %cst_81 [1] : vector<16x32xf32> to vector<16xf32>
    %205 = vector.shape_cast %204 : vector<16xf32> to vector<16x1xf32>
    %cst_82 = arith.constant 3.200000e+01 : f32
    %206 = vector.broadcast %cst_82 : f32 to vector<16x1xf32>
    %207 = arith.divf %205, %206 : vector<16x1xf32>
    %208 = vector.broadcast %200 : vector<16x1xf32> to vector<16x32xf32>
    %209 = arith.subf %194, %208 : vector<16x32xf32>
    %cst_83 = arith.constant 9.99999974E-6 : f32
    %210 = vector.broadcast %cst_83 : f32 to vector<16x1xf32>
    %211 = arith.addf %207, %210 : vector<16x1xf32>
    %212 = math.rsqrt %211 : vector<16x1xf32>
    %213 = vector.broadcast %212 : vector<16x1xf32> to vector<16x32xf32>
    %214 = arith.mulf %209, %213 : vector<16x32xf32>
    %215 = vector.broadcast %195 : vector<1x32xf32> to vector<16x32xf32>
    %216 = arith.mulf %214, %215 : vector<16x32xf32>
    %217 = vector.broadcast %196 : vector<1x32xf32> to vector<16x32xf32>
    %218 = arith.addf %216, %217 : vector<16x32xf32>
    %c0_84 = arith.constant 0 : index
    %c0_85 = arith.constant 0 : index
    %219 = vector.load %arg9[%c0_84, %c0_85] : memref<32x128xf32, #tpu.memory_space<vmem>>, vector<32x128xf32>
    %cst_86 = arith.constant dense<0.000000e+00> : vector<16x128xf32>
    %220 = tpu.matmul %218, %219, %cst_86 {dimension_numbers = #tpu.dot_dimension_numbers<[1], [0], [0], [1], [0, 0, 1, 1], [], []>} : vector<16x32xf32>, vector<32x128xf32>, vector<16x128xf32> -> vector<16x128xf32>
    %c0_87 = arith.constant 0 : index
    %c0_88 = arith.constant 0 : index
    %221 = vector.load %arg10[%c0_87, %c0_88] : memref<1x128xf32, #tpu.memory_space<vmem>>, vector<1x128xf32>
    %222 = vector.broadcast %221 : vector<1x128xf32> to vector<16x128xf32>
    %223 = arith.addf %220, %222 : vector<16x128xf32>
    %cst_89 = arith.constant 0.000000e+00 : f32
    %224 = vector.broadcast %cst_89 : f32 to vector<16x128xf32>
    %225 = arith.maximumf %223, %224 : vector<16x128xf32>
    %c0_90 = arith.constant 0 : index
    %c0_91 = arith.constant 0 : index
    %226 = vector.load %arg11[%c0_90, %c0_91] : memref<128x32xf32, #tpu.memory_space<vmem>>, vector<128x32xf32>
    %cst_92 = arith.constant dense<0.000000e+00> : vector<16x32xf32>
    %227 = tpu.matmul %225, %226, %cst_92 {dimension_numbers = #tpu.dot_dimension_numbers<[1], [0], [0], [1], [0, 0, 1, 1], [], []>} : vector<16x128xf32>, vector<128x32xf32>, vector<16x32xf32> -> vector<16x32xf32>
    %c0_93 = arith.constant 0 : index
    %c0_94 = arith.constant 0 : index
    %228 = vector.load %arg12[%c0_93, %c0_94] : memref<1x32xf32, #tpu.memory_space<vmem>>, vector<1x32xf32>
    %229 = vector.broadcast %228 : vector<1x32xf32> to vector<16x32xf32>
    %230 = arith.addf %227, %229 : vector<16x32xf32>
    %231 = arith.addf %218, %230 : vector<16x32xf32>
    %c0_95 = arith.constant 0 : index
    %c0_96 = arith.constant 0 : index
    %232 = vector.load %arg13[%c0_95, %c0_96] : memref<1x32xf32, #tpu.memory_space<vmem>>, vector<1x32xf32>
    %c0_97 = arith.constant 0 : index
    %c0_98 = arith.constant 0 : index
    %233 = vector.load %arg14[%c0_97, %c0_98] : memref<1x32xf32, #tpu.memory_space<vmem>>, vector<1x32xf32>
    %cst_99 = arith.constant dense<0.000000e+00> : vector<16xf32>
    %234 = vector.multi_reduction <add>, %231, %cst_99 [1] : vector<16x32xf32> to vector<16xf32>
    %235 = vector.shape_cast %234 : vector<16xf32> to vector<16x1xf32>
    %cst_100 = arith.constant 3.200000e+01 : f32
    %236 = vector.broadcast %cst_100 : f32 to vector<16x1xf32>
    %237 = arith.divf %235, %236 : vector<16x1xf32>
    %238 = vector.broadcast %237 : vector<16x1xf32> to vector<16x32xf32>
    %239 = arith.subf %231, %238 : vector<16x32xf32>
    %240 = arith.mulf %239, %239 : vector<16x32xf32>
    %cst_101 = arith.constant dense<0.000000e+00> : vector<16xf32>
    %241 = vector.multi_reduction <add>, %240, %cst_101 [1] : vector<16x32xf32> to vector<16xf32>
    %242 = vector.shape_cast %241 : vector<16xf32> to vector<16x1xf32>
    %cst_102 = arith.constant 3.200000e+01 : f32
    %243 = vector.broadcast %cst_102 : f32 to vector<16x1xf32>
    %244 = arith.divf %242, %243 : vector<16x1xf32>
    %245 = vector.broadcast %237 : vector<16x1xf32> to vector<16x32xf32>
    %246 = arith.subf %231, %245 : vector<16x32xf32>
    %cst_103 = arith.constant 9.99999974E-6 : f32
    %247 = vector.broadcast %cst_103 : f32 to vector<16x1xf32>
    %248 = arith.addf %244, %247 : vector<16x1xf32>
    %249 = math.rsqrt %248 : vector<16x1xf32>
    %250 = vector.broadcast %249 : vector<16x1xf32> to vector<16x32xf32>
    %251 = arith.mulf %246, %250 : vector<16x32xf32>
    %252 = vector.broadcast %232 : vector<1x32xf32> to vector<16x32xf32>
    %253 = arith.mulf %251, %252 : vector<16x32xf32>
    %254 = vector.broadcast %233 : vector<1x32xf32> to vector<16x32xf32>
    %255 = arith.addf %253, %254 : vector<16x32xf32>
    %c0_104 = arith.constant 0 : index
    %c0_105 = arith.constant 0 : index
    %256 = vector.load %arg15[%c0_104, %c0_105] : memref<16x32xf32, #tpu.memory_space<vmem>>, vector<16x32xf32>
    tpu.vector_store %arg15[%c0_104, %c0_105], %255 {strides = array<i32>} : memref<16x32xf32, #tpu.memory_space<vmem>>, vector<16x32xf32>,
    return
  }
  func.func @transform_0(%arg0: i32) -> (i32, i32) {
    %c0_i32 = arith.constant 0 : i32
    %c0_i32_0 = arith.constant 0 : i32
    return %arg0, %c0_i32 : i32, i32
  }
  func.func @transform_1(%arg0: i32) -> (i32, i32, i32) {
    %c0_i32 = arith.constant 0 : i32
    %c0_i32_0 = arith.constant 0 : i32
    %c0_i32_1 = arith.constant 0 : i32
    return %arg0, %c0_i32, %c0_i32_0 : i32, i32, i32
  }
  func.func @transform_2(%arg0: i32) -> (i32, i32) {
    %c0_i32 = arith.constant 0 : i32
    %c0_i32_0 = arith.constant 0 : i32
    %c0_i32_1 = arith.constant 0 : i32
    return %c0_i32, %c0_i32_0 : i32, i32
  }
  func.func @transform_3(%arg0: i32) -> (i32, i32) {
    %c0_i32 = arith.constant 0 : i32
    %c0_i32_0 = arith.constant 0 : i32
    %c0_i32_1 = arith.constant 0 : i32
    return %c0_i32, %c0_i32_0 : i32, i32
  }
  func.func @transform_4(%arg0: i32) -> (i32, i32) {
    %c0_i32 = arith.constant 0 : i32
    %c0_i32_0 = arith.constant 0 : i32
    %c0_i32_1 = arith.constant 0 : i32
    return %c0_i32, %c0_i32_0 : i32, i32
  }
  func.func @transform_5(%arg0: i32) -> (i32, i32) {
    %c0_i32 = arith.constant 0 : i32
    %c0_i32_0 = arith.constant 0 : i32
    %c0_i32_1 = arith.constant 0 : i32
    return %c0_i32, %c0_i32_0 : i32, i32
  }
  func.func @transform_6(%arg0: i32) -> (i32, i32) {
    %c0_i32 = arith.constant 0 : i32
    %c0_i32_0 = arith.constant 0 : i32
    %c0_i32_1 = arith.constant 0 : i32
    return %c0_i32, %c0_i32_0 : i32, i32
  }
  func.func @transform_7(%arg0: i32) -> (i32, i32) {
    %c0_i32 = arith.constant 0 : i32
    %c0_i32_0 = arith.constant 0 : i32
    %c0_i32_1 = arith.constant 0 : i32
    return %c0_i32, %c0_i32_0 : i32, i32
  }
  func.func @transform_8(%arg0: i32) -> (i32, i32) {
    %c0_i32 = arith.constant 0 : i32
    %c0_i32_0 = arith.constant 0 : i32
    %c0_i32_1 = arith.constant 0 : i32
    return %c0_i32, %c0_i32_0 : i32, i32
  }
  func.func @transform_9(%arg0: i32) -> (i32, i32) {
    %c0_i32 = arith.constant 0 : i32
    %c0_i32_0 = arith.constant 0 : i32
    %c0_i32_1 = arith.constant 0 : i32
    return %c0_i32, %c0_i32_0 : i32, i32
  }
  func.func @transform_10(%arg0: i32) -> (i32, i32) {
    %c0_i32 = arith.constant 0 : i32
    %c0_i32_0 = arith.constant 0 : i32
    %c0_i32_1 = arith.constant 0 : i32
    return %c0_i32, %c0_i32_0 : i32, i32
  }
  func.func @transform_11(%arg0: i32) -> (i32, i32) {
    %c0_i32 = arith.constant 0 : i32
    %c0_i32_0 = arith.constant 0 : i32
    %c0_i32_1 = arith.constant 0 : i32
    return %c0_i32, %c0_i32_0 : i32, i32
  }
  func.func @transform_12(%arg0: i32) -> (i32, i32) {
    %c0_i32 = arith.constant 0 : i32
    %c0_i32_0 = arith.constant 0 : i32
    %c0_i32_1 = arith.constant 0 : i32
    return %c0_i32, %c0_i32_0 : i32, i32
  }
  func.func @transform_13(%arg0: i32) -> (i32, i32) {
    %c0_i32 = arith.constant 0 : i32
    %c0_i32_0 = arith.constant 0 : i32
    %c0_i32_1 = arith.constant 0 : i32
    return %c0_i32, %c0_i32_0 : i32, i32
  }
  func.func @transform_14(%arg0: i32) -> (i32, i32) {
    %c0_i32 = arith.constant 0 : i32
    %c0_i32_0 = arith.constant 0 : i32
    return %arg0, %c0_i32 : i32, i32
  }
}

</mosaic_0001>

<llo_original>
// kernel: tpu_custom_call.1
$region0: #{tpu_custom_call.1}
  #allocation0 [shape = 'u32[]', space=smem, size = 0x4, offset = 0x4, fixed_abs, tag = 'smem constant byte address 0x4 - core index']
  #allocation1 [shape = 'u32[144,128]{1,0:T(1,128)}', space=vmem, size = 0x12000, scoped, tag = 'internal scratch']
  %s0 = inlined_call_operand.vmem [shape: f32[16,32], index: 0, kind: input, shape index: {}]
  %s1 = inlined_call_operand.vmem [shape: f32[2,1,8], index: 1, kind: input, shape index: {}]
  %s2 = inlined_call_operand.vmem [shape: f32[32,96], index: 2, kind: input, shape index: {}]
  %s3 = inlined_call_operand.vmem [shape: f32[1,96], index: 3, kind: input, shape index: {}]
  %s4 = inlined_call_operand.vmem [shape: f32[32,32], index: 4, kind: input, shape index: {}]
  %s5 = inlined_call_operand.vmem [shape: f32[1,32], index: 5, kind: input, shape index: {}]
  %s6 = inlined_call_operand.vmem [shape: f32[1,32], index: 6, kind: input, shape index: {}]
  %s7 = inlined_call_operand.vmem [shape: f32[1,32], index: 7, kind: input, shape index: {}]
  %s8 = inlined_call_operand.vmem [shape: f32[32,128], index: 8, kind: input, shape index: {}]
  %s9 = inlined_call_operand.vmem [shape: f32[1,128], index: 9, kind: input, shape index: {}]
  %s10 = inlined_call_operand.vmem [shape: f32[128,32], index: 10, kind: input, shape index: {}]
  %s11 = inlined_call_operand.vmem [shape: f32[1,32], index: 11, kind: input, shape index: {}]
  %s12 = inlined_call_operand.vmem [shape: f32[1,32], index: 12, kind: input, shape index: {}]
  %s13 = inlined_call_operand.vmem [shape: f32[1,32], index: 13, kind: input, shape index: {}]
  %s14 = inlined_call_operand.hbm [shape: f32[16,32], index: 14, kind: output, shape index: {}]
  %s15 = sld [smem:[#allocation0]]
  $region66: #{tpu_custom_call.1} parent=0
    _
  %s17 = ssub.s32 1, %s15
  %s18 = scalar_select 0, %s17, %s15
  $region1: #{tpu_custom_call.1} parent=0
    #allocation2 [shape = 'u8[8192]{0}', space=vmem, size = 0x2000, scoped, tag = 'output window, operand 0, single buffered']
    #allocation3 [shape = 's32[1]{0}', space=sflag, size = 0x4, scoped, tag = 'scoped memory for tpu_custom_call.1']
    %19 = vsyncpa [#allocation3], 0
    // Predicated region
    $region2: #{tpu_custom_call.1} parent=1 // pred_check
      _
    $region3: #{tpu_custom_call.1} parent=1 // pred_check_branch
      %21 = sbr.rel (0) target = $region5
    $region4: #{tpu_custom_call.1} parent=1 // pred_region
      _
    $region5: #{tpu_custom_call.1} parent=1 // pred_fallthru
      _
    // Predicated region
    $region6: #{tpu_custom_call.1} parent=1 // pred_check
      _
    $region7: #{tpu_custom_call.1} parent=1 // pred_check_branch
      %23 = sbr.rel (0) target = $region9
    $region8: #{tpu_custom_call.1} parent=1 // pred_region
      _
    $region9: #{tpu_custom_call.1} parent=1 // pred_fallthru
      _
    // Predicated region
    $region10: #{tpu_custom_call.1} parent=1 // pred_check
      _
    $region11: #{tpu_custom_call.1} parent=1 // pred_check_branch
      %25 = sbr.rel (0) target = $region13
    $region12: #{tpu_custom_call.1} parent=1 // pred_region
      _
    $region13: #{tpu_custom_call.1} parent=1 // pred_fallthru
      _
    // Predicated region
    $region14: #{tpu_custom_call.1} parent=1 // pred_check
      _
    $region15: #{tpu_custom_call.1} parent=1 // pred_check_branch
      %27 = sbr.rel (0) target = $region17
    $region16: #{tpu_custom_call.1} parent=1 // pred_region
      _
    $region17: #{tpu_custom_call.1} parent=1 // pred_fallthru
      _
    // Predicated region
    $region18: #{tpu_custom_call.1} parent=1 // pred_check
      _
    $region19: #{tpu_custom_call.1} parent=1 // pred_check_branch
      %29 = sbr.rel (0) target = $region21
    $region20: #{tpu_custom_call.1} parent=1 // pred_region
      _
    $region21: #{tpu_custom_call.1} parent=1 // pred_fallthru
      _
    // Predicated region
    $region22: #{tpu_custom_call.1} parent=1 // pred_check
      _
    $region23: #{tpu_custom_call.1} parent=1 // pred_check_branch
      %31 = sbr.rel (0) target = $region25
    $region24: #{tpu_custom_call.1} parent=1 // pred_region
      _
    $region25: #{tpu_custom_call.1} parent=1 // pred_fallthru
      _
    // Predicated region
    $region26: #{tpu_custom_call.1} parent=1 // pred_check
      _
    $region27: #{tpu_custom_call.1} parent=1 // pred_check_branch
      %33 = sbr.rel (0) target = $region29
    $region28: #{tpu_custom_call.1} parent=1 // pred_region
      _
    $region29: #{tpu_custom_call.1} parent=1 // pred_fallthru
      _
    // Predicated region
    $region30: #{tpu_custom_call.1} parent=1 // pred_check
      _
    $region31: #{tpu_custom_call.1} parent=1 // pred_check_branch
      %35 = sbr.rel (0) target = $region33
    $region32: #{tpu_custom_call.1} parent=1 // pred_region
      _
    $region33: #{tpu_custom_call.1} parent=1 // pred_fallthru
      _
    // Predicated region
    $region34: #{tpu_custom_call.1} parent=1 // pred_check
      _
    $region35: #{tpu_custom_call.1} parent=1 // pred_check_branch
      %37 = sbr.rel (0) target = $region37
    $region36: #{tpu_custom_call.1} parent=1 // pred_region
      _
    $region37: #{tpu_custom_call.1} parent=1 // pred_fallthru
      _
    // Predicated region
    $region38: #{tpu_custom_call.1} parent=1 // pred_check
      _
    $region39: #{tpu_custom_call.1} parent=1 // pred_check_branch
      %39 = sbr.rel (0) target = $region41
    $region40: #{tpu_custom_call.1} parent=1 // pred_region
      _
    $region41: #{tpu_custom_call.1} parent=1 // pred_fallthru
      _
    // Predicated region
    $region42: #{tpu_custom_call.1} parent=1 // pred_check
      _
    $region43: #{tpu_custom_call.1} parent=1 // pred_check_branch
      %41 = sbr.rel (0) target = $region45
    $region44: #{tpu_custom_call.1} parent=1 // pred_region
      _
    $region45: #{tpu_custom_call.1} parent=1 // pred_fallthru
      _
    // Predicated region
    $region46: #{tpu_custom_call.1} parent=1 // pred_check
      _
    $region47: #{tpu_custom_call.1} parent=1 // pred_check_branch
      %43 = sbr.rel (0) target = $region49
    $region48: #{tpu_custom_call.1} parent=1 // pred_region
      _
    $region49: #{tpu_custom_call.1} parent=1 // pred_fallthru
      _
    // Predicated region
    $region50: #{tpu_custom_call.1} parent=1 // pred_check
      _
    $region51: #{tpu_custom_call.1} parent=1 // pred_check_branch
      %45 = sbr.rel (0) target = $region53
    $region52: #{tpu_custom_call.1} parent=1 // pred_region
      _
    $region53: #{tpu_custom_call.1} parent=1 // pred_fallthru
      _
    // Predicated region
    $region54: #{tpu_custom_call.1} parent=1 // pred_check
      _
    $region55: #{tpu_custom_call.1} parent=1 // pred_check_branch
      %47 = sbr.rel (0) target = $region57
    $region56: #{tpu_custom_call.1} parent=1 // pred_region
      _
    $region57: #{tpu_custom_call.1} parent=1 // pred_fallthru
      _
    %v48 = vld [vmem:[%s0] sm:$0xff]
    %v49 = vld [vmem:[%s0 + $0x8] sm:$0xff]
    %v50 = vld [vmem:[%s2] sm:$0xff]
    %v51 = vld [vmem:[%s2 + $0x8] sm:$0xff]
    %v52 = vld [vmem:[%s2 + $0x10] sm:$0xff]
    %v53 = vld [vmem:[%s2 + $0x18] sm:$0xff]
    %v54 = vld [vmem:[%s3] sm:$0x1]
    %v56 = vlaneseq
    %v57 = vshrl.u32 %v56, 7
    %v58 = vsub.s32 0, %v57
    %v59 = vrot.slane %v54, %v58
    %vm61 = vcmask 261120
    %v63 = vsel %vm61, %v48, 0
    %v66 = vsel %vm61, %v49, 0
    %68 = vmatprep.subr.mxu0 0.0
    %69 = vmatpush1.msra.mxu0 0.0
    %70 = vmatprep.subr.mxu0 0.0
    %71 = vmatpush1.msra.mxu0 0.0
    %72 = vmatprep.subr.mxu0 0.0
    %73 = vmatpush1.msra.mxu0 0.0
    %74 = vmatprep.subr.mxu0 0.0
    %75 = vmatpush1.msra.mxu0 0.0
    %76 = vmatprep.subr.mxu0 0.0
    %77 = vmatpush1.msra.mxu0 0.0
    %78 = vmatprep.subr.mxu0 0.0
    %79 = vmatpush1.msra.mxu0 0.0
    %80 = vmatprep.subr.mxu0 0.0
    %81 = vmatpush1.msra.mxu0 0.0
    %82 = vmatprep.subr.mxu0 0.0
    %83 = vmatpush1.msra.mxu0 0.0
    %84 = vmatprep.subr.mxu0 0.0
    %85 = vmatpush1.msra.mxu0 0.0
    %86 = vmatprep.subr.mxu0 0.0
    %87 = vmatpush1.msra.mxu0 0.0
    %88 = vmatprep.subr.mxu0 0.0
    %89 = vmatpush1.msra.mxu0 0.0
    %90 = vmatprep.subr.mxu0 0.0
    %91 = vmatpush1.msra.mxu0 0.0
    %92 = vmatprep.subr.mxu0 0.0
    %93 = vmatpush1.msra.mxu0 %v53
    %94 = vmatprep.subr.mxu0 0.0
    %95 = vmatpush1.msra.mxu0 %v52
    %96 = vmatprep.subr.mxu0 0.0
    %97 = vmatpush1.msra.mxu0 %v51
    %98 = vmatprep.subr.mxu0 0.0
    %99 = vmatpush1.msra.mxu0 %v50
    %100 = vmatprep.subr.mxu0 0.0
    %101 = vmatpush2.msra.mxu0 0.0
    %102 = vmatprep.subr.mxu0 0.0
    %103 = vmatpush2.msra.mxu0 0.0
    %104 = vmatprep.subr.mxu0 0.0
    %105 = vmatpush2.msra.mxu0 0.0
    %106 = vmatprep.subr.mxu0 0.0
    %107 = vmatpush2.msra.mxu0 0.0
    %108 = vmatprep.subr.mxu0 0.0
    %109 = vmatpush2.msra.mxu0 0.0
    %110 = vmatprep.subr.mxu0 0.0
    %111 = vmatpush2.msra.mxu0 0.0
    %112 = vmatprep.subr.mxu0 0.0
    %113 = vmatpush2.msra.mxu0 0.0
    %114 = vmatprep.subr.mxu0 0.0
    %115 = vmatpush2.msra.mxu0 0.0
    %116 = vmatprep.subr.mxu0 0.0
    %117 = vmatpush2.msra.mxu0 0.0
    %118 = vmatprep.subr.mxu0 0.0
    %119 = vmatpush2.msra.mxu0 0.0
    %120 = vmatprep.subr.mxu0 0.0
    %121 = vmatpush2.msra.mxu0 0.0
    %122 = vmatprep.subr.mxu0 0.0
    %123 = vmatpush2.msra.mxu0 0.0
    %124 = vmatprep.subr.mxu0 0.0
    %125 = vmatpush2.msra.mxu0 0.0
    %126 = vmatprep.subr.mxu0 0.0
    %127 = vmatpush2.msra.mxu0 0.0
    %128 = vmatprep.subr.mxu0 0.0
    %129 = vmatpush2.msra.mxu0 0.0
    %130 = vmatprep.subr.mxu0 0.0
    %131 = vmatpush2.msra.mxu0 0.0
    %132 = vmatprep.mubr.f32.mxu0 0.0
    %133 = vmatmul.mubr.f32.gmra.mxu0 %v63
    %v134 = vpop.f32.mrf.mxu0
    %v135 = vadd.f32 %v59, %v134
    %v136 = vpop.f32.mrf.mxu0
    %137 = vmatprep.mubr.f32.mxu0 0.0
    %138 = vmatmul.mubr.f32.gmra.mxu0 %v66
    %v139 = vpop.f32.mrf.mxu0
    %v140 = vadd.f32 %v59, %v139
    %v141 = vpop.f32.mrf.mxu0
    %142 = vdwg.mxu0
    %v143 = vld [vmem:[%s1] sm:$0x1]
    %145 = vrot.lane.b32.xlu0 %v135, 96
    %v146 = vpop.permute.xlu0 %145
    %vm147 = vcmask 64512
    %v148 = vsel %vm147, %v135, 0
    %v150 = vsel %vm147, %v146, 0
    %152 = vmatprep.subr.mxu0 0.0
    %153 = vmatpush1.xpose.msra.mxu0 0.0
    %154 = vmatprep.subr.mxu0 0.0
    %155 = vmatpush1.xpose.msra.mxu0 0.0
    %156 = vmatprep.subr.mxu0 0.0
    %157 = vmatpush1.xpose.msra.mxu0 0.0
    %158 = vmatprep.subr.mxu0 0.0
    %159 = vmatpush1.xpose.msra.mxu0 0.0
    %160 = vmatprep.subr.mxu0 0.0
    %161 = vmatpush1.xpose.msra.mxu0 0.0
    %162 = vmatprep.subr.mxu0 0.0
    %163 = vmatpush1.xpose.msra.mxu0 0.0
    %164 = vmatprep.subr.mxu0 0.0
    %165 = vmatpush1.xpose.msra.mxu0 0.0
    %166 = vmatprep.subr.mxu0 0.0
    %167 = vmatpush1.xpose.msra.mxu0 0.0
    %168 = vmatprep.subr.mxu0 0.0
    %169 = vmatpush1.xpose.msra.mxu0 0.0
    %170 = vmatprep.subr.mxu0 0.0
    %171 = vmatpush1.xpose.msra.mxu0 0.0
    %172 = vmatprep.subr.mxu0 0.0
    %173 = vmatpush1.xpose.msra.mxu0 0.0
    %174 = vmatprep.subr.mxu0 0.0
    %175 = vmatpush1.xpose.msra.mxu0 0.0
    %176 = vmatprep.subr.mxu0 0.0
    %177 = vmatpush1.xpose.msra.mxu0 0.0
    %178 = vmatprep.subr.mxu0 0.0
    %179 = vmatpush1.xpose.msra.mxu0 0.0
    %180 = vmatprep.subr.mxu0 0.0
    %181 = vmatpush1.xpose.msra.mxu0 0.0
    %182 = vmatprep.subr.mxu0 0.0
    %183 = vmatpush1.xpose.msra.mxu0 %v150
    %184 = vmatprep.subr.mxu0 0.0
    %185 = vmatpush2.xpose.msra.mxu0 0.0
    %186 = vmatprep.subr.mxu0 0.0
    %187 = vmatpush2.xpose.msra.mxu0 0.0
    %188 = vmatprep.subr.mxu0 0.0
    %189 = vmatpush2.xpose.msra.mxu0 0.0
    %190 = vmatprep.subr.mxu0 0.0
    %191 = vmatpush2.xpose.msra.mxu0 0.0
    %192 = vmatprep.subr.mxu0 0.0
    %193 = vmatpush2.xpose.msra.mxu0 0.0
    %194 = vmatprep.subr.mxu0 0.0
    %195 = vmatpush2.xpose.msra.mxu0 0.0
    %196 = vmatprep.subr.mxu0 0.0
    %197 = vmatpush2.xpose.msra.mxu0 0.0
    %198 = vmatprep.subr.mxu0 0.0
    %199 = vmatpush2.xpose.msra.mxu0 0.0
    %200 = vmatprep.subr.mxu0 0.0
    %201 = vmatpush2.xpose.msra.mxu0 0.0
    %202 = vmatprep.subr.mxu0 0.0
    %203 = vmatpush2.xpose.msra.mxu0 0.0
    %204 = vmatprep.subr.mxu0 0.0
    %205 = vmatpush2.xpose.msra.mxu0 0.0
    %206 = vmatprep.subr.mxu0 0.0
    %207 = vmatpush2.xpose.msra.mxu0 0.0
    %208 = vmatprep.subr.mxu0 0.0
    %209 = vmatpush2.xpose.msra.mxu0 0.0
    %210 = vmatprep.subr.mxu0 0.0
    %211 = vmatpush2.xpose.msra.mxu0 0.0
    %212 = vmatprep.subr.mxu0 0.0
    %213 = vmatpush2.xpose.msra.mxu0 0.0
    %214 = vmatprep.subr.mxu0 0.0
    %215 = vmatpush2.xpose.msra.mxu0 0.0
    %216 = vmatprep.mubr.f32.mxu0 0.0
    %217 = vmatmul.mubr.f32.gmra.mxu0 %v148
    %v218 = vpop.f32.mrf.mxu0
    %v219 = vadd.f32 0.0, %v218
    %v220 = vpop.f32.mrf.mxu0
    %221 = vdwg.mxu0
    %v222 = vmul.f32 %v219, 0.35355338
    %v224 = vlaneseq
    %v225 = vshrl.u32 %v224, 7
    %v226 = vsub.s32 0, %v225
    %v227 = vrot.slane %v143, %v226
    %v229 = vadd.f32 %v222, %v227
    %v230 = vsel %vm147, %v229, -inf
    %231 = vmax.xlane.f32.xlu0 %v230
    %v232 = vpop.xlane.xlu0 %231
    %v233 = vsub.f32 %v229, %v232
    %v234 = vmul.f32 %v233, 1.442695
    %v235 = vpow.pop %v234
    %v236 = vsel %vm147, %v235, 0.0
    %237 = vadd.xlane.f32.xlu0 %v236
    %v238 = vpop.xlane.xlu0 %237
    %v239 = vrcp.pop %v238
    %v240 = vmul.f32 %v235, %v239
    %241 = vrot.lane.b32.xlu0 %v135, 64
    %v242 = vpop.permute.xlu0 %241
    %v245 = vsel %vm147, %v240, 0
    %247 = vmatprep.subr.mxu0 0.0
    %248 = vmatpush1.msra.mxu0 0.0
    %249 = vmatprep.subr.mxu0 0.0
    %250 = vmatpush1.msra.mxu0 0.0
    %251 = vmatprep.subr.mxu0 0.0
    %252 = vmatpush1.msra.mxu0 0.0
    %253 = vmatprep.subr.mxu0 0.0
    %254 = vmatpush1.msra.mxu0 0.0
    %255 = vmatprep.subr.mxu0 0.0
    %256 = vmatpush1.msra.mxu0 0.0
    %257 = vmatprep.subr.mxu0 0.0
    %258 = vmatpush1.msra.mxu0 0.0
    %259 = vmatprep.subr.mxu0 0.0
    %260 = vmatpush1.msra.mxu0 0.0
    %261 = vmatprep.subr.mxu0 0.0
    %262 = vmatpush1.msra.mxu0 0.0
    %263 = vmatprep.subr.mxu0 0.0
    %264 = vmatpush1.msra.mxu0 0.0
    %265 = vmatprep.subr.mxu0 0.0
    %266 = vmatpush1.msra.mxu0 0.0
    %267 = vmatprep.subr.mxu0 0.0
    %268 = vmatpush1.msra.mxu0 0.0
    %269 = vmatprep.subr.mxu0 0.0
    %270 = vmatpush1.msra.mxu0 0.0
    %271 = vmatprep.subr.mxu0 0.0
    %272 = vmatpush1.msra.mxu0 0.0
    %273 = vmatprep.subr.mxu0 0.0
    %274 = vmatpush1.msra.mxu0 0.0
    %275 = vmatprep.subr.mxu0 0.0
    %276 = vmatpush1.msra.mxu0 0.0
    %277 = vmatprep.subr.mxu0 0.0
    %278 = vmatpush1.msra.mxu0 %v242
    %279 = vmatprep.subr.mxu0 0.0
    %280 = vmatpush2.msra.mxu0 0.0
    %281 = vmatprep.subr.mxu0 0.0
    %282 = vmatpush2.msra.mxu0 0.0
    %283 = vmatprep.subr.mxu0 0.0
    %284 = vmatpush2.msra.mxu0 0.0
    %285 = vmatprep.subr.mxu0 0.0
    %286 = vmatpush2.msra.mxu0 0.0
    %287 = vmatprep.subr.mxu0 0.0
    %288 = vmatpush2.msra.mxu0 0.0
    %289 = vmatprep.subr.mxu0 0.0
    %290 = vmatpush2.msra.mxu0 0.0
    %291 = vmatprep.subr.mxu0 0.0
    %292 = vmatpush2.msra.mxu0 0.0
    %293 = vmatprep.subr.mxu0 0.0
    %294 = vmatpush2.msra.mxu0 0.0
    %295 = vmatprep.subr.mxu0 0.0
    %296 = vmatpush2.msra.mxu0 0.0
    %297 = vmatprep.subr.mxu0 0.0
    %298 = vmatpush2.msra.mxu0 0.0
    %299 = vmatprep.subr.mxu0 0.0
    %300 = vmatpush2.msra.mxu0 0.0
    %301 = vmatprep.subr.mxu0 0.0
    %302 = vmatpush2.msra.mxu0 0.0
    %303 = vmatprep.subr.mxu0 0.0
    %304 = vmatpush2.msra.mxu0 0.0
    %305 = vmatprep.subr.mxu0 0.0
    %306 = vmatpush2.msra.mxu0 0.0
    %307 = vmatprep.subr.mxu0 0.0
    %308 = vmatpush2.msra.mxu0 0.0
    %309 = vmatprep.subr.mxu0 0.0
    %310 = vmatpush2.msra.mxu0 0.0
    %311 = vmatprep.mubr.f32.mxu0 0.0
    %312 = vmatmul.mubr.f32.gmra.mxu0 %v245
    %v313 = vpop.f32.mrf.mxu0
    %v314 = vadd.f32 0.0, %v313
    %v315 = vpop.f32.mrf.mxu0
    %316 = vdwg.mxu0
    %v317 = vld [vmem:[%s4] sm:$0xff]
    %318 = vrot.lane.b32.xlu0 %v135, 120
    %v319 = vpop.permute.xlu0 %318
    %320 = vrot.lane.b32.xlu0 %v135, 88
    %v321 = vpop.permute.xlu0 %320
    %v322 = vsel %vm147, %v319, 0
    %v324 = vsel %vm147, %v321, 0
    %326 = vmatprep.subr.mxu0 0.0
    %327 = vmatpush1.xpose.msra.mxu0 0.0
    %328 = vmatprep.subr.mxu0 0.0
    %329 = vmatpush1.xpose.msra.mxu0 0.0
    %330 = vmatprep.subr.mxu0 0.0
    %331 = vmatpush1.xpose.msra.mxu0 0.0
    %332 = vmatprep.subr.mxu0 0.0
    %333 = vmatpush1.xpose.msra.mxu0 0.0
    %334 = vmatprep.subr.mxu0 0.0
    %335 = vmatpush1.xpose.msra.mxu0 0.0
    %336 = vmatprep.subr.mxu0 0.0
    %337 = vmatpush1.xpose.msra.mxu0 0.0
    %338 = vmatprep.subr.mxu0 0.0
    %339 = vmatpush1.xpose.msra.mxu0 0.0
    %340 = vmatprep.subr.mxu0 0.0
    %341 = vmatpush1.xpose.msra.mxu0 0.0
    %342 = vmatprep.subr.mxu0 0.0
    %343 = vmatpush1.xpose.msra.mxu0 0.0
    %344 = vmatprep.subr.mxu0 0.0
    %345 = vmatpush1.xpose.msra.mxu0 0.0
    %346 = vmatprep.subr.mxu0 0.0
    %347 = vmatpush1.xpose.msra.mxu0 0.0
    %348 = vmatprep.subr.mxu0 0.0
    %349 = vmatpush1.xpose.msra.mxu0 0.0
    %350 = vmatprep.subr.mxu0 0.0
    %351 = vmatpush1.xpose.msra.mxu0 0.0
    %352 = vmatprep.subr.mxu0 0.0
    %353 = vmatpush1.xpose.msra.mxu0 0.0
    %354 = vmatprep.subr.mxu0 0.0
    %355 = vmatpush1.xpose.msra.mxu0 0.0
    %356 = vmatprep.subr.mxu0 0.0
    %357 = vmatpush1.xpose.msra.mxu0 %v324
    %358 = vmatprep.subr.mxu0 0.0
    %359 = vmatpush2.xpose.msra.mxu0 0.0
    %360 = vmatprep.subr.mxu0 0.0
    %361 = vmatpush2.xpose.msra.mxu0 0.0
    %362 = vmatprep.subr.mxu0 0.0
    %363 = vmatpush2.xpose.msra.mxu0 0.0
    %364 = vmatprep.subr.mxu0 0.0
    %365 = vmatpush2.xpose.msra.mxu0 0.0
    %366 = vmatprep.subr.mxu0 0.0
    %367 = vmatpush2.xpose.msra.mxu0 0.0
    %368 = vmatprep.subr.mxu0 0.0
    %369 = vmatpush2.xpose.msra.mxu0 0.0
    %370 = vmatprep.subr.mxu0 0.0
    %371 = vmatpush2.xpose.msra.mxu0 0.0
    %372 = vmatprep.subr.mxu0 0.0
    %373 = vmatpush2.xpose.msra.mxu0 0.0
    %374 = vmatprep.subr.mxu0 0.0
    %375 = vmatpush2.xpose.msra.mxu0 0.0
    %376 = vmatprep.subr.mxu0 0.0
    %377 = vmatpush2.xpose.msra.mxu0 0.0
    %378 = vmatprep.subr.mxu0 0.0
    %379 = vmatpush2.xpose.msra.mxu0 0.0
    %380 = vmatprep.subr.mxu0 0.0
    %381 = vmatpush2.xpose.msra.mxu0 0.0
    %382 = vmatprep.subr.mxu0 0.0
    %383 = vmatpush2.xpose.msra.mxu0 0.0
    %384 = vmatprep.subr.mxu0 0.0
    %385 = vmatpush2.xpose.msra.mxu0 0.0
    %386 = vmatprep.subr.mxu0 0.0
    %387 = vmatpush2.xpose.msra.mxu0 0.0
    %388 = vmatprep.subr.mxu0 0.0
    %389 = vmatpush2.xpose.msra.mxu0 0.0
    %390 = vmatprep.mubr.f32.mxu0 0.0
    %391 = vmatmul.mubr.f32.gmra.mxu0 %v322
    %v392 = vpop.f32.mrf.mxu0
    %v393 = vadd.f32 0.0, %v392
    %v394 = vpop.f32.mrf.mxu0
    %395 = vdwg.mxu0
    %v396 = vmul.f32 %v393, 0.35355338
    %v397 = vadd.f32 %v396, %v227
    %v398 = vsel %vm147, %v397, -inf
    %399 = vmax.xlane.f32.xlu0 %v398
    %v400 = vpop.xlane.xlu0 %399
    %v401 = vsub.f32 %v397, %v400
    %v402 = vmul.f32 %v401, 1.442695
    %v403 = vpow.pop %v402
    %v404 = vsel %vm147, %v403, 0.0
    %405 = vadd.xlane.f32.xlu0 %v404
    %v406 = vpop.xlane.xlu0 %405
    %v407 = vrcp.pop %v406
    %v408 = vmul.f32 %v403, %v407
    %409 = vrot.lane.b32.xlu0 %v135, 56
    %v410 = vpop.permute.xlu0 %409
    %v413 = vsel %vm147, %v408, 0
    %415 = vmatprep.subr.mxu0 0.0
    %416 = vmatpush1.msra.mxu0 0.0
    %417 = vmatprep.subr.mxu0 0.0
    %418 = vmatpush1.msra.mxu0 0.0
    %419 = vmatprep.subr.mxu0 0.0
    %420 = vmatpush1.msra.mxu0 0.0
    %421 = vmatprep.subr.mxu0 0.0
    %422 = vmatpush1.msra.mxu0 0.0
    %423 = vmatprep.subr.mxu0 0.0
    %424 = vmatpush1.msra.mxu0 0.0
    %425 = vmatprep.subr.mxu0 0.0
    %426 = vmatpush1.msra.mxu0 0.0
    %427 = vmatprep.subr.mxu0 0.0
    %428 = vmatpush1.msra.mxu0 0.0
    %429 = vmatprep.subr.mxu0 0.0
    %430 = vmatpush1.msra.mxu0 0.0
    %431 = vmatprep.subr.mxu0 0.0
    %432 = vmatpush1.msra.mxu0 0.0
    %433 = vmatprep.subr.mxu0 0.0
    %434 = vmatpush1.msra.mxu0 0.0
    %435 = vmatprep.subr.mxu0 0.0
    %436 = vmatpush1.msra.mxu0 0.0
    %437 = vmatprep.subr.mxu0 0.0
    %438 = vmatpush1.msra.mxu0 0.0
    %439 = vmatprep.subr.mxu0 0.0
    %440 = vmatpush1.msra.mxu0 0.0
    %441 = vmatprep.subr.mxu0 0.0
    %442 = vmatpush1.msra.mxu0 0.0
    %443 = vmatprep.subr.mxu0 0.0
    %444 = vmatpush1.msra.mxu0 0.0
    %445 = vmatprep.subr.mxu0 0.0
    %446 = vmatpush1.msra.mxu0 %v410
    %447 = vmatprep.subr.mxu0 0.0
    %448 = vmatpush2.msra.mxu0 0.0
    %449 = vmatprep.subr.mxu0 0.0
    %450 = vmatpush2.msra.mxu0 0.0
    %451 = vmatprep.subr.mxu0 0.0
    %452 = vmatpush2.msra.mxu0 0.0
    %453 = vmatprep.subr.mxu0 0.0
    %454 = vmatpush2.msra.mxu0 0.0
    %455 = vmatprep.subr.mxu0 0.0
    %456 = vmatpush2.msra.mxu0 0.0
    %457 = vmatprep.subr.mxu0 0.0
    %458 = vmatpush2.msra.mxu0 0.0
    %459 = vmatprep.subr.mxu0 0.0
    %460 = vmatpush2.msra.mxu0 0.0
    %461 = vmatprep.subr.mxu0 0.0
    %462 = vmatpush2.msra.mxu0 0.0
    %463 = vmatprep.subr.mxu0 0.0
    %464 = vmatpush2.msra.mxu0 0.0
    %465 = vmatprep.subr.mxu0 0.0
    %466 = vmatpush2.msra.mxu0 0.0
    %467 = vmatprep.subr.mxu0 0.0
    %468 = vmatpush2.msra.mxu0 0.0
    %469 = vmatprep.subr.mxu0 0.0
    %470 = vmatpush2.msra.mxu0 0.0
    %471 = vmatprep.subr.mxu0 0.0
    %472 = vmatpush2.msra.mxu0 0.0
    %473 = vmatprep.subr.mxu0 0.0
    %474 = vmatpush2.msra.mxu0 0.0
    %475 = vmatprep.subr.mxu0 0.0
    %476 = vmatpush2.msra.mxu0 0.0
    %477 = vmatprep.subr.mxu0 0.0
    %478 = vmatpush2.msra.mxu0 0.0
    %479 = vmatprep.mubr.f32.mxu0 0.0
    %480 = vmatmul.mubr.f32.gmra.mxu0 %v413
    %v481 = vpop.f32.mrf.mxu0
    %v482 = vadd.f32 0.0, %v481
    %v483 = vpop.f32.mrf.mxu0
    %484 = vdwg.mxu0
    %v485 = vld [vmem:[%s4 + $0x8] sm:$0xff]
    %v487 = vsel %vm147, %v482, 0
    %489 = vmatprep.subr.mxu0 0.0
    %490 = vmatpush1.msra.mxu0 0.0
    %491 = vmatprep.subr.mxu0 0.0
    %492 = vmatpush1.msra.mxu0 0.0
    %493 = vmatprep.subr.mxu0 0.0
    %494 = vmatpush1.msra.mxu0 0.0
    %495 = vmatprep.subr.mxu0 0.0
    %496 = vmatpush1.msra.mxu0 0.0
    %497 = vmatprep.subr.mxu0 0.0
    %498 = vmatpush1.msra.mxu0 0.0
    %499 = vmatprep.subr.mxu0 0.0
    %500 = vmatpush1.msra.mxu0 0.0
    %501 = vmatprep.subr.mxu0 0.0
    %502 = vmatpush1.msra.mxu0 0.0
    %503 = vmatprep.subr.mxu0 0.0
    %504 = vmatpush1.msra.mxu0 0.0
    %505 = vmatprep.subr.mxu0 0.0
    %506 = vmatpush1.msra.mxu0 0.0
    %507 = vmatprep.subr.mxu0 0.0
    %508 = vmatpush1.msra.mxu0 0.0
    %509 = vmatprep.subr.mxu0 0.0
    %510 = vmatpush1.msra.mxu0 0.0
    %511 = vmatprep.subr.mxu0 0.0
    %512 = vmatpush1.msra.mxu0 0.0
    %513 = vmatprep.subr.mxu0 0.0
    %514 = vmatpush1.msra.mxu0 0.0
    %515 = vmatprep.subr.mxu0 0.0
    %516 = vmatpush1.msra.mxu0 0.0
    %517 = vmatprep.subr.mxu0 0.0
    %518 = vmatpush1.msra.mxu0 0.0
    %519 = vmatprep.subr.mxu0 0.0
    %520 = vmatpush1.msra.mxu0 %v485
    %521 = vmatprep.subr.mxu0 0.0
    %522 = vmatpush2.msra.mxu0 0.0
    %523 = vmatprep.subr.mxu0 0.0
    %524 = vmatpush2.msra.mxu0 0.0
    %525 = vmatprep.subr.mxu0 0.0
    %526 = vmatpush2.msra.mxu0 0.0
    %527 = vmatprep.subr.mxu0 0.0
    %528 = vmatpush2.msra.mxu0 0.0
    %529 = vmatprep.subr.mxu0 0.0
    %530 = vmatpush2.msra.mxu0 0.0
    %531 = vmatprep.subr.mxu0 0.0
    %532 = vmatpush2.msra.mxu0 0.0
    %533 = vmatprep.subr.mxu0 0.0
    %534 = vmatpush2.msra.mxu0 0.0
    %535 = vmatprep.subr.mxu0 0.0
    %536 = vmatpush2.msra.mxu0 0.0
    %537 = vmatprep.subr.mxu0 0.0
    %538 = vmatpush2.msra.mxu0 0.0
    %539 = vmatprep.subr.mxu0 0.0
    %540 = vmatpush2.msra.mxu0 0.0
    %541 = vmatprep.subr.mxu0 0.0
    %542 = vmatpush2.msra.mxu0 0.0
    %543 = vmatprep.subr.mxu0 0.0
    %544 = vmatpush2.msra.mxu0 0.0
    %545 = vmatprep.subr.mxu0 0.0
    %546 = vmatpush2.msra.mxu0 0.0
    %547 = vmatprep.subr.mxu0 0.0
    %548 = vmatpush2.msra.mxu0 0.0
    %549 = vmatprep.subr.mxu0 0.0
    %550 = vmatpush2.msra.mxu0 0.0
    %551 = vmatprep.subr.mxu0 0.0
    %552 = vmatpush2.msra.mxu0 0.0
    %553 = vmatprep.mubr.f32.mxu0 0.0
    %554 = vmatmul.mubr.f32.gmra.mxu0 %v487
    %v555 = vpop.f32.mrf.mxu0
    %v556 = vadd.f32 0.0, %v555
    %v557 = vpop.f32.mrf.mxu0
    %558 = vdwg.mxu0
    %v560 = vsel %vm147, %v314, 0
    %562 = vmatprep.subr.mxu0 0.0
    %563 = vmatpush1.msra.mxu0 0.0
    %564 = vmatprep.subr.mxu0 0.0
    %565 = vmatpush1.msra.mxu0 0.0
    %566 = vmatprep.subr.mxu0 0.0
    %567 = vmatpush1.msra.mxu0 0.0
    %568 = vmatprep.subr.mxu0 0.0
    %569 = vmatpush1.msra.mxu0 0.0
    %570 = vmatprep.subr.mxu0 0.0
    %571 = vmatpush1.msra.mxu0 0.0
    %572 = vmatprep.subr.mxu0 0.0
    %573 = vmatpush1.msra.mxu0 0.0
    %574 = vmatprep.subr.mxu0 0.0
    %575 = vmatpush1.msra.mxu0 0.0
    %576 = vmatprep.subr.mxu0 0.0
    %577 = vmatpush1.msra.mxu0 0.0
    %578 = vmatprep.subr.mxu0 0.0
    %579 = vmatpush1.msra.mxu0 0.0
    %580 = vmatprep.subr.mxu0 0.0
    %581 = vmatpush1.msra.mxu0 0.0
    %582 = vmatprep.subr.mxu0 0.0
    %583 = vmatpush1.msra.mxu0 0.0
    %584 = vmatprep.subr.mxu0 0.0
    %585 = vmatpush1.msra.mxu0 0.0
    %586 = vmatprep.subr.mxu0 0.0
    %587 = vmatpush1.msra.mxu0 0.0
    %588 = vmatprep.subr.mxu0 0.0
    %589 = vmatpush1.msra.mxu0 0.0
    %590 = vmatprep.subr.mxu0 0.0
    %591 = vmatpush1.msra.mxu0 0.0
    %592 = vmatprep.subr.mxu0 0.0
    %593 = vmatpush1.msra.mxu0 %v317
    %594 = vmatprep.subr.mxu0 0.0
    %595 = vmatpush2.msra.mxu0 0.0
    %596 = vmatprep.subr.mxu0 0.0
    %597 = vmatpush2.msra.mxu0 0.0
    %598 = vmatprep.subr.mxu0 0.0
    %599 = vmatpush2.msra.mxu0 0.0
    %600 = vmatprep.subr.mxu0 0.0
    %601 = vmatpush2.msra.mxu0 0.0
    %602 = vmatprep.subr.mxu0 0.0
    %603 = vmatpush2.msra.mxu0 0.0
    %604 = vmatprep.subr.mxu0 0.0
    %605 = vmatpush2.msra.mxu0 0.0
    %606 = vmatprep.subr.mxu0 0.0
    %607 = vmatpush2.msra.mxu0 0.0
    %608 = vmatprep.subr.mxu0 0.0
    %609 = vmatpush2.msra.mxu0 0.0
    %610 = vmatprep.subr.mxu0 0.0
    %611 = vmatpush2.msra.mxu0 0.0
    %612 = vmatprep.subr.mxu0 0.0
    %613 = vmatpush2.msra.mxu0 0.0
    %614 = vmatprep.subr.mxu0 0.0
    %615 = vmatpush2.msra.mxu0 0.0
    %616 = vmatprep.subr.mxu0 0.0
    %617 = vmatpush2.msra.mxu0 0.0
    %618 = vmatprep.subr.mxu0 0.0
    %619 = vmatpush2.msra.mxu0 0.0
    %620 = vmatprep.subr.mxu0 0.0
    %621 = vmatpush2.msra.mxu0 0.0
    %622 = vmatprep.subr.mxu0 0.0
    %623 = vmatpush2.msra.mxu0 0.0
    %624 = vmatprep.subr.mxu0 0.0
    %625 = vmatpush2.msra.mxu0 0.0
    %626 = vmatprep.mubr.f32.mxu0 0.0
    %627 = vmatmul.mubr.f32.gmra.mxu0 %v560
    %v628 = vpop.f32.mrf.mxu0
    %v629 = vadd.f32 %v556, %v628
    %v630 = vpop.f32.mrf.mxu0
    %631 = vdwg.mxu0
    %632 = vrot.lane.b32.xlu0 %v135, 112
    %v633 = vpop.permute.xlu0 %632
    %634 = vrot.lane.b32.xlu0 %v135, 80
    %v635 = vpop.permute.xlu0 %634
    %v636 = vsel %vm147, %v633, 0
    %v638 = vsel %vm147, %v635, 0
    %640 = vmatprep.subr.mxu0 0.0
    %641 = vmatpush1.xpose.msra.mxu0 0.0
    %642 = vmatprep.subr.mxu0 0.0
    %643 = vmatpush1.xpose.msra.mxu0 0.0
    %644 = vmatprep.subr.mxu0 0.0
    %645 = vmatpush1.xpose.msra.mxu0 0.0
    %646 = vmatprep.subr.mxu0 0.0
    %647 = vmatpush1.xpose.msra.mxu0 0.0
    %648 = vmatprep.subr.mxu0 0.0
    %649 = vmatpush1.xpose.msra.mxu0 0.0
    %650 = vmatprep.subr.mxu0 0.0
    %651 = vmatpush1.xpose.msra.mxu0 0.0
    %652 = vmatprep.subr.mxu0 0.0
    %653 = vmatpush1.xpose.msra.mxu0 0.0
    %654 = vmatprep.subr.mxu0 0.0
    %655 = vmatpush1.xpose.msra.mxu0 0.0
    %656 = vmatprep.subr.mxu0 0.0
    %657 = vmatpush1.xpose.msra.mxu0 0.0
    %658 = vmatprep.subr.mxu0 0.0
    %659 = vmatpush1.xpose.msra.mxu0 0.0
    %660 = vmatprep.subr.mxu0 0.0
    %661 = vmatpush1.xpose.msra.mxu0 0.0
    %662 = vmatprep.subr.mxu0 0.0
    %663 = vmatpush1.xpose.msra.mxu0 0.0
    %664 = vmatprep.subr.mxu0 0.0
    %665 = vmatpush1.xpose.msra.mxu0 0.0
    %666 = vmatprep.subr.mxu0 0.0
    %667 = vmatpush1.xpose.msra.mxu0 0.0
    %668 = vmatprep.subr.mxu0 0.0
    %669 = vmatpush1.xpose.msra.mxu0 0.0
    %670 = vmatprep.subr.mxu0 0.0
    %671 = vmatpush1.xpose.msra.mxu0 %v638
    %672 = vmatprep.subr.mxu0 0.0
    %673 = vmatpush2.xpose.msra.mxu0 0.0
    %674 = vmatprep.subr.mxu0 0.0
    %675 = vmatpush2.xpose.msra.mxu0 0.0
    %676 = vmatprep.subr.mxu0 0.0
    %677 = vmatpush2.xpose.msra.mxu0 0.0
    %678 = vmatprep.subr.mxu0 0.0
    %679 = vmatpush2.xpose.msra.mxu0 0.0
    %680 = vmatprep.subr.mxu0 0.0
    %681 = vmatpush2.xpose.msra.mxu0 0.0
    %682 = vmatprep.subr.mxu0 0.0
    %683 = vmatpush2.xpose.msra.mxu0 0.0
    %684 = vmatprep.subr.mxu0 0.0
    %685 = vmatpush2.xpose.msra.mxu0 0.0
    %686 = vmatprep.subr.mxu0 0.0
    %687 = vmatpush2.xpose.msra.mxu0 0.0
    %688 = vmatprep.subr.mxu0 0.0
    %689 = vmatpush2.xpose.msra.mxu0 0.0
    %690 = vmatprep.subr.mxu0 0.0
    %691 = vmatpush2.xpose.msra.mxu0 0.0
    %692 = vmatprep.subr.mxu0 0.0
    %693 = vmatpush2.xpose.msra.mxu0 0.0
    %694 = vmatprep.subr.mxu0 0.0
    %695 = vmatpush2.xpose.msra.mxu0 0.0
    %696 = vmatprep.subr.mxu0 0.0
    %697 = vmatpush2.xpose.msra.mxu0 0.0
    %698 = vmatprep.subr.mxu0 0.0
    %699 = vmatpush2.xpose.msra.mxu0 0.0
    %700 = vmatprep.subr.mxu0 0.0
    %701 = vmatpush2.xpose.msra.mxu0 0.0
    %702 = vmatprep.subr.mxu0 0.0
    %703 = vmatpush2.xpose.msra.mxu0 0.0
    %704 = vmatprep.mubr.f32.mxu0 0.0
    %705 = vmatmul.mubr.f32.gmra.mxu0 %v636
    %v706 = vpop.f32.mrf.mxu0
    %v707 = vadd.f32 0.0, %v706
    %v708 = vpop.f32.mrf.mxu0
    %709 = vdwg.mxu0
    %v710 = vmul.f32 %v707, 0.35355338
    %v711 = vadd.f32 %v710, %v227
    %v712 = vsel %vm147, %v711, -inf
    %713 = vmax.xlane.f32.xlu0 %v712
    %v714 = vpop.xlane.xlu0 %713
    %v715 = vsub.f32 %v711, %v714
    %v716 = vmul.f32 %v715, 1.442695
    %v717 = vpow.pop %v716
    %v718 = vsel %vm147, %v717, 0.0
    %719 = vadd.xlane.f32.xlu0 %v718
    %v720 = vpop.xlane.xlu0 %719
    %v721 = vrcp.pop %v720
    %v722 = vmul.f32 %v717, %v721
    %723 = vrot.lane.b32.xlu0 %v135, 48
    %v724 = vpop.permute.xlu0 %723
    %v727 = vsel %vm147, %v722, 0
    %729 = vmatprep.subr.mxu0 0.0
    %730 = vmatpush1.msra.mxu0 0.0
    %731 = vmatprep.subr.mxu0 0.0
    %732 = vmatpush1.msra.mxu0 0.0
    %733 = vmatprep.subr.mxu0 0.0
    %734 = vmatpush1.msra.mxu0 0.0
    %735 = vmatprep.subr.mxu0 0.0
    %736 = vmatpush1.msra.mxu0 0.0
    %737 = vmatprep.subr.mxu0 0.0
    %738 = vmatpush1.msra.mxu0 0.0
    %739 = vmatprep.subr.mxu0 0.0
    %740 = vmatpush1.msra.mxu0 0.0
    %741 = vmatprep.subr.mxu0 0.0
    %742 = vmatpush1.msra.mxu0 0.0
    %743 = vmatprep.subr.mxu0 0.0
    %744 = vmatpush1.msra.mxu0 0.0
    %745 = vmatprep.subr.mxu0 0.0
    %746 = vmatpush1.msra.mxu0 0.0
    %747 = vmatprep.subr.mxu0 0.0
    %748 = vmatpush1.msra.mxu0 0.0
    %749 = vmatprep.subr.mxu0 0.0
    %750 = vmatpush1.msra.mxu0 0.0
    %751 = vmatprep.subr.mxu0 0.0
    %752 = vmatpush1.msra.mxu0 0.0
    %753 = vmatprep.subr.mxu0 0.0
    %754 = vmatpush1.msra.mxu0 0.0
    %755 = vmatprep.subr.mxu0 0.0
    %756 = vmatpush1.msra.mxu0 0.0
    %757 = vmatprep.subr.mxu0 0.0
    %758 = vmatpush1.msra.mxu0 0.0
    %759 = vmatprep.subr.mxu0 0.0
    %760 = vmatpush1.msra.mxu0 %v724
    %761 = vmatprep.subr.mxu0 0.0
    %762 = vmatpush2.msra.mxu0 0.0
    %763 = vmatprep.subr.mxu0 0.0
    %764 = vmatpush2.msra.mxu0 0.0
    %765 = vmatprep.subr.mxu0 0.0
    %766 = vmatpush2.msra.mxu0 0.0
    %767 = vmatprep.subr.mxu0 0.0
    %768 = vmatpush2.msra.mxu0 0.0
    %769 = vmatprep.subr.mxu0 0.0
    %770 = vmatpush2.msra.mxu0 0.0
    %771 = vmatprep.subr.mxu0 0.0
    %772 = vmatpush2.msra.mxu0 0.0
    %773 = vmatprep.subr.mxu0 0.0
    %774 = vmatpush2.msra.mxu0 0.0
    %775 = vmatprep.subr.mxu0 0.0
    %776 = vmatpush2.msra.mxu0 0.0
    %777 = vmatprep.subr.mxu0 0.0
    %778 = vmatpush2.msra.mxu0 0.0
    %779 = vmatprep.subr.mxu0 0.0
    %780 = vmatpush2.msra.mxu0 0.0
    %781 = vmatprep.subr.mxu0 0.0
    %782 = vmatpush2.msra.mxu0 0.0
    %783 = vmatprep.subr.mxu0 0.0
    %784 = vmatpush2.msra.mxu0 0.0
    %785 = vmatprep.subr.mxu0 0.0
    %786 = vmatpush2.msra.mxu0 0.0
    %787 = vmatprep.subr.mxu0 0.0
    %788 = vmatpush2.msra.mxu0 0.0
    %789 = vmatprep.subr.mxu0 0.0
    %790 = vmatpush2.msra.mxu0 0.0
    %791 = vmatprep.subr.mxu0 0.0
    %792 = vmatpush2.msra.mxu0 0.0
    %793 = vmatprep.mubr.f32.mxu0 0.0
    %794 = vmatmul.mubr.f32.gmra.mxu0 %v727
    %v795 = vpop.f32.mrf.mxu0
    %v796 = vadd.f32 0.0, %v795
    %v797 = vpop.f32.mrf.mxu0
    %798 = vdwg.mxu0
    %v799 = vld [vmem:[%s4 + $0x10] sm:$0xff]
    %v801 = vsel %vm147, %v796, 0
    %803 = vmatprep.subr.mxu0 0.0
    %804 = vmatpush1.msra.mxu0 0.0
    %805 = vmatprep.subr.mxu0 0.0
    %806 = vmatpush1.msra.mxu0 0.0
    %807 = vmatprep.subr.mxu0 0.0
    %808 = vmatpush1.msra.mxu0 0.0
    %809 = vmatprep.subr.mxu0 0.0
    %810 = vmatpush1.msra.mxu0 0.0
    %811 = vmatprep.subr.mxu0 0.0
    %812 = vmatpush1.msra.mxu0 0.0
    %813 = vmatprep.subr.mxu0 0.0
    %814 = vmatpush1.msra.mxu0 0.0
    %815 = vmatprep.subr.mxu0 0.0
    %816 = vmatpush1.msra.mxu0 0.0
    %817 = vmatprep.subr.mxu0 0.0
    %818 = vmatpush1.msra.mxu0 0.0
    %819 = vmatprep.subr.mxu0 0.0
    %820 = vmatpush1.msra.mxu0 0.0
    %821 = vmatprep.subr.mxu0 0.0
    %822 = vmatpush1.msra.mxu0 0.0
    %823 = vmatprep.subr.mxu0 0.0
    %824 = vmatpush1.msra.mxu0 0.0
    %825 = vmatprep.subr.mxu0 0.0
    %826 = vmatpush1.msra.mxu0 0.0
    %827 = vmatprep.subr.mxu0 0.0
    %828 = vmatpush1.msra.mxu0 0.0
    %829 = vmatprep.subr.mxu0 0.0
    %830 = vmatpush1.msra.mxu0 0.0
    %831 = vmatprep.subr.mxu0 0.0
    %832 = vmatpush1.msra.mxu0 0.0
    %833 = vmatprep.subr.mxu0 0.0
    %834 = vmatpush1.msra.mxu0 %v799
    %835 = vmatprep.subr.mxu0 0.0
    %836 = vmatpush2.msra.mxu0 0.0
    %837 = vmatprep.subr.mxu0 0.0
    %838 = vmatpush2.msra.mxu0 0.0
    %839 = vmatprep.subr.mxu0 0.0
    %840 = vmatpush2.msra.mxu0 0.0
    %841 = vmatprep.subr.mxu0 0.0
    %842 = vmatpush2.msra.mxu0 0.0
    %843 = vmatprep.subr.mxu0 0.0
    %844 = vmatpush2.msra.mxu0 0.0
    %845 = vmatprep.subr.mxu0 0.0
    %846 = vmatpush2.msra.mxu0 0.0
    %847 = vmatprep.subr.mxu0 0.0
    %848 = vmatpush2.msra.mxu0 0.0
    %849 = vmatprep.subr.mxu0 0.0
    %850 = vmatpush2.msra.mxu0 0.0
    %851 = vmatprep.subr.mxu0 0.0
    %852 = vmatpush2.msra.mxu0 0.0
    %853 = vmatprep.subr.mxu0 0.0
    %854 = vmatpush2.msra.mxu0 0.0
    %855 = vmatprep.subr.mxu0 0.0
    %856 = vmatpush2.msra.mxu0 0.0
    %857 = vmatprep.subr.mxu0 0.0
    %858 = vmatpush2.msra.mxu0 0.0
    %859 = vmatprep.subr.mxu0 0.0
    %860 = vmatpush2.msra.mxu0 0.0
    %861 = vmatprep.subr.mxu0 0.0
    %862 = vmatpush2.msra.mxu0 0.0
    %863 = vmatprep.subr.mxu0 0.0
    %864 = vmatpush2.msra.mxu0 0.0
    %865 = vmatprep.subr.mxu0 0.0
    %866 = vmatpush2.msra.mxu0 0.0
    %867 = vmatprep.mubr.f32.mxu0 0.0
    %868 = vmatmul.mubr.f32.gmra.mxu0 %v801
    %v869 = vpop.f32.mrf.mxu0
    %v870 = vadd.f32 0.0, %v869
    %v871 = vpop.f32.mrf.mxu0
    %872 = vdwg.mxu0
    %v873 = vadd.f32 %v629, %v870
    %874 = vrot.lane.b32.xlu0 %v135, 104
    %v875 = vpop.permute.xlu0 %874
    %876 = vrot.lane.b32.xlu0 %v135, 72
    %v877 = vpop.permute.xlu0 %876
    %v878 = vsel %vm147, %v875, 0
    %v880 = vsel %vm147, %v877, 0
    %882 = vmatprep.subr.mxu0 0.0
    %883 = vmatpush1.xpose.msra.mxu0 0.0
    %884 = vmatprep.subr.mxu0 0.0
    %885 = vmatpush1.xpose.msra.mxu0 0.0
    %886 = vmatprep.subr.mxu0 0.0
    %887 = vmatpush1.xpose.msra.mxu0 0.0
    %888 = vmatprep.subr.mxu0 0.0
    %889 = vmatpush1.xpose.msra.mxu0 0.0
    %890 = vmatprep.subr.mxu0 0.0
    %891 = vmatpush1.xpose.msra.mxu0 0.0
    %892 = vmatprep.subr.mxu0 0.0
    %893 = vmatpush1.xpose.msra.mxu0 0.0
    %894 = vmatprep.subr.mxu0 0.0
    %895 = vmatpush1.xpose.msra.mxu0 0.0
    %896 = vmatprep.subr.mxu0 0.0
    %897 = vmatpush1.xpose.msra.mxu0 0.0
    %898 = vmatprep.subr.mxu0 0.0
    %899 = vmatpush1.xpose.msra.mxu0 0.0
    %900 = vmatprep.subr.mxu0 0.0
    %901 = vmatpush1.xpose.msra.mxu0 0.0
    %902 = vmatprep.subr.mxu0 0.0
    %903 = vmatpush1.xpose.msra.mxu0 0.0
    %904 = vmatprep.subr.mxu0 0.0
    %905 = vmatpush1.xpose.msra.mxu0 0.0
    %906 = vmatprep.subr.mxu0 0.0
    %907 = vmatpush1.xpose.msra.mxu0 0.0
    %908 = vmatprep.subr.mxu0 0.0
    %909 = vmatpush1.xpose.msra.mxu0 0.0
    %910 = vmatprep.subr.mxu0 0.0
    %911 = vmatpush1.xpose.msra.mxu0 0.0
    %912 = vmatprep.subr.mxu0 0.0
    %913 = vmatpush1.xpose.msra.mxu0 %v880
    %914 = vmatprep.subr.mxu0 0.0
    %915 = vmatpush2.xpose.msra.mxu0 0.0
    %916 = vmatprep.subr.mxu0 0.0
    %917 = vmatpush2.xpose.msra.mxu0 0.0
    %918 = vmatprep.subr.mxu0 0.0
    %919 = vmatpush2.xpose.msra.mxu0 0.0
    %920 = vmatprep.subr.mxu0 0.0
    %921 = vmatpush2.xpose.msra.mxu0 0.0
    %922 = vmatprep.subr.mxu0 0.0
    %923 = vmatpush2.xpose.msra.mxu0 0.0
    %924 = vmatprep.subr.mxu0 0.0
    %925 = vmatpush2.xpose.msra.mxu0 0.0
    %926 = vmatprep.subr.mxu0 0.0
    %927 = vmatpush2.xpose.msra.mxu0 0.0
    %928 = vmatprep.subr.mxu0 0.0
    %929 = vmatpush2.xpose.msra.mxu0 0.0
    %930 = vmatprep.subr.mxu0 0.0
    %931 = vmatpush2.xpose.msra.mxu0 0.0
    %932 = vmatprep.subr.mxu0 0.0
    %933 = vmatpush2.xpose.msra.mxu0 0.0
    %934 = vmatprep.subr.mxu0 0.0
    %935 = vmatpush2.xpose.msra.mxu0 0.0
    %936 = vmatprep.subr.mxu0 0.0
    %937 = vmatpush2.xpose.msra.mxu0 0.0
    %938 = vmatprep.subr.mxu0 0.0
    %939 = vmatpush2.xpose.msra.mxu0 0.0
    %940 = vmatprep.subr.mxu0 0.0
    %941 = vmatpush2.xpose.msra.mxu0 0.0
    %942 = vmatprep.subr.mxu0 0.0
    %943 = vmatpush2.xpose.msra.mxu0 0.0
    %944 = vmatprep.subr.mxu0 0.0
    %945 = vmatpush2.xpose.msra.mxu0 0.0
    %946 = vmatprep.mubr.f32.mxu0 0.0
    %947 = vmatmul.mubr.f32.gmra.mxu0 %v878
    %v948 = vpop.f32.mrf.mxu0
    %v949 = vadd.f32 0.0, %v948
    %v950 = vpop.f32.mrf.mxu0
    %951 = vdwg.mxu0
    %v952 = vmul.f32 %v949, 0.35355338
    %v953 = vadd.f32 %v952, %v227
    %v954 = vsel %vm147, %v953, -inf
    %955 = vmax.xlane.f32.xlu0 %v954
    %v956 = vpop.xlane.xlu0 %955
    %v957 = vsub.f32 %v953, %v956
    %v958 = vmul.f32 %v957, 1.442695
    %v959 = vpow.pop %v958
    %v960 = vsel %vm147, %v959, 0.0
    %961 = vadd.xlane.f32.xlu0 %v960
    %v962 = vpop.xlane.xlu0 %961
    %v963 = vrcp.pop %v962
    %v964 = vmul.f32 %v959, %v963
    %965 = vrot.lane.b32.xlu0 %v135, 40
    %v966 = vpop.permute.xlu0 %965
    %v969 = vsel %vm147, %v964, 0
    %971 = vmatprep.subr.mxu0 0.0
    %972 = vmatpush1.msra.mxu0 0.0
    %973 = vmatprep.subr.mxu0 0.0
    %974 = vmatpush1.msra.mxu0 0.0
    %975 = vmatprep.subr.mxu0 0.0
    %976 = vmatpush1.msra.mxu0 0.0
    %977 = vmatprep.subr.mxu0 0.0
    %978 = vmatpush1.msra.mxu0 0.0
    %979 = vmatprep.subr.mxu0 0.0
    %980 = vmatpush1.msra.mxu0 0.0
    %981 = vmatprep.subr.mxu0 0.0
    %982 = vmatpush1.msra.mxu0 0.0
    %983 = vmatprep.subr.mxu0 0.0
    %984 = vmatpush1.msra.mxu0 0.0
    %985 = vmatprep.subr.mxu0 0.0
    %986 = vmatpush1.msra.mxu0 0.0
    %987 = vmatprep.subr.mxu0 0.0
    %988 = vmatpush1.msra.mxu0 0.0
    %989 = vmatprep.subr.mxu0 0.0
    %990 = vmatpush1.msra.mxu0 0.0
    %991 = vmatprep.subr.mxu0 0.0
    %992 = vmatpush1.msra.mxu0 0.0
    %993 = vmatprep.subr.mxu0 0.0
    %994 = vmatpush1.msra.mxu0 0.0
    %995 = vmatprep.subr.mxu0 0.0
    %996 = vmatpush1.msra.mxu0 0.0
    %997 = vmatprep.subr.mxu0 0.0
    %998 = vmatpush1.msra.mxu0 0.0
    %999 = vmatprep.subr.mxu0 0.0
    %1000 = vmatpush1.msra.mxu0 0.0
    %1001 = vmatprep.subr.mxu0 0.0
    %1002 = vmatpush1.msra.mxu0 %v966
    %1003 = vmatprep.subr.mxu0 0.0
    %1004 = vmatpush2.msra.mxu0 0.0
    %1005 = vmatprep.subr.mxu0 0.0
    %1006 = vmatpush2.msra.mxu0 0.0
    %1007 = vmatprep.subr.mxu0 0.0
    %1008 = vmatpush2.msra.mxu0 0.0
    %1009 = vmatprep.subr.mxu0 0.0
    %1010 = vmatpush2.msra.mxu0 0.0
    %1011 = vmatprep.subr.mxu0 0.0
    %1012 = vmatpush2.msra.mxu0 0.0
    %1013 = vmatprep.subr.mxu0 0.0
    %1014 = vmatpush2.msra.mxu0 0.0
    %1015 = vmatprep.subr.mxu0 0.0
    %1016 = vmatpush2.msra.mxu0 0.0
    %1017 = vmatprep.subr.mxu0 0.0
    %1018 = vmatpush2.msra.mxu0 0.0
    %1019 = vmatprep.subr.mxu0 0.0
    %1020 = vmatpush2.msra.mxu0 0.0
    %1021 = vmatprep.subr.mxu0 0.0
    %1022 = vmatpush2.msra.mxu0 0.0
    %1023 = vmatprep.subr.mxu0 0.0
    %1024 = vmatpush2.msra.mxu0 0.0
    %1025 = vmatprep.subr.mxu0 0.0
    %1026 = vmatpush2.msra.mxu0 0.0
    %1027 = vmatprep.subr.mxu0 0.0
    %1028 = vmatpush2.msra.mxu0 0.0
    %1029 = vmatprep.subr.mxu0 0.0
    %1030 = vmatpush2.msra.mxu0 0.0
    %1031 = vmatprep.subr.mxu0 0.0
    %1032 = vmatpush2.msra.mxu0 0.0
    %1033 = vmatprep.subr.mxu0 0.0
    %1034 = vmatpush2.msra.mxu0 0.0
    %1035 = vmatprep.mubr.f32.mxu0 0.0
    %1036 = vmatmul.mubr.f32.gmra.mxu0 %v969
    %v1037 = vpop.f32.mrf.mxu0
    %v1038 = vadd.f32 0.0, %v1037
    %v1039 = vpop.f32.mrf.mxu0
    %1040 = vdwg.mxu0
    %v1041 = vld [vmem:[%s4 + $0x18] sm:$0xff]
    %v1043 = vsel %vm147, %v1038, 0
    %1045 = vmatprep.subr.mxu0 0.0
    %1046 = vmatpush1.msra.mxu0 0.0
    %1047 = vmatprep.subr.mxu0 0.0
    %1048 = vmatpush1.msra.mxu0 0.0
    %1049 = vmatprep.subr.mxu0 0.0
    %1050 = vmatpush1.msra.mxu0 0.0
    %1051 = vmatprep.subr.mxu0 0.0
    %1052 = vmatpush1.msra.mxu0 0.0
    %1053 = vmatprep.subr.mxu0 0.0
    %1054 = vmatpush1.msra.mxu0 0.0
    %1055 = vmatprep.subr.mxu0 0.0
    %1056 = vmatpush1.msra.mxu0 0.0
    %1057 = vmatprep.subr.mxu0 0.0
    %1058 = vmatpush1.msra.mxu0 0.0
    %1059 = vmatprep.subr.mxu0 0.0
    %1060 = vmatpush1.msra.mxu0 0.0
    %1061 = vmatprep.subr.mxu0 0.0
    %1062 = vmatpush1.msra.mxu0 0.0
    %1063 = vmatprep.subr.mxu0 0.0
    %1064 = vmatpush1.msra.mxu0 0.0
    %1065 = vmatprep.subr.mxu0 0.0
    %1066 = vmatpush1.msra.mxu0 0.0
    %1067 = vmatprep.subr.mxu0 0.0
    %1068 = vmatpush1.msra.mxu0 0.0
    %1069 = vmatprep.subr.mxu0 0.0
    %1070 = vmatpush1.msra.mxu0 0.0
    %1071 = vmatprep.subr.mxu0 0.0
    %1072 = vmatpush1.msra.mxu0 0.0
    %1073 = vmatprep.subr.mxu0 0.0
    %1074 = vmatpush1.msra.mxu0 0.0
    %1075 = vmatprep.subr.mxu0 0.0
    %1076 = vmatpush1.msra.mxu0 %v1041
    %1077 = vmatprep.subr.mxu0 0.0
    %1078 = vmatpush2.msra.mxu0 0.0
    %1079 = vmatprep.subr.mxu0 0.0
    %1080 = vmatpush2.msra.mxu0 0.0
    %1081 = vmatprep.subr.mxu0 0.0
    %1082 = vmatpush2.msra.mxu0 0.0
    %1083 = vmatprep.subr.mxu0 0.0
    %1084 = vmatpush2.msra.mxu0 0.0
    %1085 = vmatprep.subr.mxu0 0.0
    %1086 = vmatpush2.msra.mxu0 0.0
    %1087 = vmatprep.subr.mxu0 0.0
    %1088 = vmatpush2.msra.mxu0 0.0
    %1089 = vmatprep.subr.mxu0 0.0
    %1090 = vmatpush2.msra.mxu0 0.0
    %1091 = vmatprep.subr.mxu0 0.0
    %1092 = vmatpush2.msra.mxu0 0.0
    %1093 = vmatprep.subr.mxu0 0.0
    %1094 = vmatpush2.msra.mxu0 0.0
    %1095 = vmatprep.subr.mxu0 0.0
    %1096 = vmatpush2.msra.mxu0 0.0
    %1097 = vmatprep.subr.mxu0 0.0
    %1098 = vmatpush2.msra.mxu0 0.0
    %1099 = vmatprep.subr.mxu0 0.0
    %1100 = vmatpush2.msra.mxu0 0.0
    %1101 = vmatprep.subr.mxu0 0.0
    %1102 = vmatpush2.msra.mxu0 0.0
    %1103 = vmatprep.subr.mxu0 0.0
    %1104 = vmatpush2.msra.mxu0 0.0
    %1105 = vmatprep.subr.mxu0 0.0
    %1106 = vmatpush2.msra.mxu0 0.0
    %1107 = vmatprep.subr.mxu0 0.0
    %1108 = vmatpush2.msra.mxu0 0.0
    %1109 = vmatprep.mubr.f32.mxu0 0.0
    %1110 = vmatmul.mubr.f32.gmra.mxu0 %v1043
    %v1111 = vpop.f32.mrf.mxu0
    %v1112 = vadd.f32 0.0, %v1111
    %v1113 = vpop.f32.mrf.mxu0
    %1114 = vdwg.mxu0
    %v1115 = vadd.f32 %v873, %v1112
    %s1116 = scalar_lea.vmem %s1, 1
    %v1117 = vld [vmem:[%s1116] sm:$0x1]
    %1119 = vrot.lane.b32.xlu0 %v140, 96
    %v1120 = vpop.permute.xlu0 %1119
    %v1121 = vsel %vm147, %v140, 0
    %v1123 = vsel %vm147, %v1120, 0
    %1125 = vmatprep.subr.mxu0 0.0
    %1126 = vmatpush1.xpose.msra.mxu0 0.0
    %1127 = vmatprep.subr.mxu0 0.0
    %1128 = vmatpush1.xpose.msra.mxu0 0.0
    %1129 = vmatprep.subr.mxu0 0.0
    %1130 = vmatpush1.xpose.msra.mxu0 0.0
    %1131 = vmatprep.subr.mxu0 0.0
    %1132 = vmatpush1.xpose.msra.mxu0 0.0
    %1133 = vmatprep.subr.mxu0 0.0
    %1134 = vmatpush1.xpose.msra.mxu0 0.0
    %1135 = vmatprep.subr.mxu0 0.0
    %1136 = vmatpush1.xpose.msra.mxu0 0.0
    %1137 = vmatprep.subr.mxu0 0.0
    %1138 = vmatpush1.xpose.msra.mxu0 0.0
    %1139 = vmatprep.subr.mxu0 0.0
    %1140 = vmatpush1.xpose.msra.mxu0 0.0
    %1141 = vmatprep.subr.mxu0 0.0
    %1142 = vmatpush1.xpose.msra.mxu0 0.0
    %1143 = vmatprep.subr.mxu0 0.0
    %1144 = vmatpush1.xpose.msra.mxu0 0.0
    %1145 = vmatprep.subr.mxu0 0.0
    %1146 = vmatpush1.xpose.msra.mxu0 0.0
    %1147 = vmatprep.subr.mxu0 0.0
    %1148 = vmatpush1.xpose.msra.mxu0 0.0
    %1149 = vmatprep.subr.mxu0 0.0
    %1150 = vmatpush1.xpose.msra.mxu0 0.0
    %1151 = vmatprep.subr.mxu0 0.0
    %1152 = vmatpush1.xpose.msra.mxu0 0.0
    %1153 = vmatprep.subr.mxu0 0.0
    %1154 = vmatpush1.xpose.msra.mxu0 0.0
    %1155 = vmatprep.subr.mxu0 0.0
    %1156 = vmatpush1.xpose.msra.mxu0 %v1123
    %1157 = vmatprep.subr.mxu0 0.0
    %1158 = vmatpush2.xpose.msra.mxu0 0.0
    %1159 = vmatprep.subr.mxu0 0.0
    %1160 = vmatpush2.xpose.msra.mxu0 0.0
    %1161 = vmatprep.subr.mxu0 0.0
    %1162 = vmatpush2.xpose.msra.mxu0 0.0
    %1163 = vmatprep.subr.mxu0 0.0
    %1164 = vmatpush2.xpose.msra.mxu0 0.0
    %1165 = vmatprep.subr.mxu0 0.0
    %1166 = vmatpush2.xpose.msra.mxu0 0.0
    %1167 = vmatprep.subr.mxu0 0.0
    %1168 = vmatpush2.xpose.msra.mxu0 0.0
    %1169 = vmatprep.subr.mxu0 0.0
    %1170 = vmatpush2.xpose.msra.mxu0 0.0
    %1171 = vmatprep.subr.mxu0 0.0
    %1172 = vmatpush2.xpose.msra.mxu0 0.0
    %1173 = vmatprep.subr.mxu0 0.0
    %1174 = vmatpush2.xpose.msra.mxu0 0.0
    %1175 = vmatprep.subr.mxu0 0.0
    %1176 = vmatpush2.xpose.msra.mxu0 0.0
    %1177 = vmatprep.subr.mxu0 0.0
    %1178 = vmatpush2.xpose.msra.mxu0 0.0
    %1179 = vmatprep.subr.mxu0 0.0
    %1180 = vmatpush2.xpose.msra.mxu0 0.0
    %1181 = vmatprep.subr.mxu0 0.0
    %1182 = vmatpush2.xpose.msra.mxu0 0.0
    %1183 = vmatprep.subr.mxu0 0.0
    %1184 = vmatpush2.xpose.msra.mxu0 0.0
    %1185 = vmatprep.subr.mxu0 0.0
    %1186 = vmatpush2.xpose.msra.mxu0 0.0
    %1187 = vmatprep.subr.mxu0 0.0
    %1188 = vmatpush2.xpose.msra.mxu0 0.0
    %1189 = vmatprep.mubr.f32.mxu0 0.0
    %1190 = vmatmul.mubr.f32.gmra.mxu0 %v1121
    %v1191 = vpop.f32.mrf.mxu0
    %v1192 = vadd.f32 0.0, %v1191
    %v1193 = vpop.f32.mrf.mxu0
    %1194 = vdwg.mxu0
    %v1195 = vmul.f32 %v1192, 0.35355338
    %v1197 = vlaneseq
    %v1198 = vshrl.u32 %v1197, 7
    %v1199 = vsub.s32 0, %v1198
    %v1200 = vrot.slane %v1117, %v1199
    %v1202 = vadd.f32 %v1195, %v1200
    %v1203 = vsel %vm147, %v1202, -inf
    %1204 = vmax.xlane.f32.xlu0 %v1203
    %v1205 = vpop.xlane.xlu0 %1204
    %v1206 = vsub.f32 %v1202, %v1205
    %v1207 = vmul.f32 %v1206, 1.442695
    %v1208 = vpow.pop %v1207
    %v1209 = vsel %vm147, %v1208, 0.0
    %1210 = vadd.xlane.f32.xlu0 %v1209
    %v1211 = vpop.xlane.xlu0 %1210
    %v1212 = vrcp.pop %v1211
    %v1213 = vmul.f32 %v1208, %v1212
    %1214 = vrot.lane.b32.xlu0 %v140, 64
    %v1215 = vpop.permute.xlu0 %1214
    %v1218 = vsel %vm147, %v1213, 0
    %1220 = vmatprep.subr.mxu0 0.0
    %1221 = vmatpush1.msra.mxu0 0.0
    %1222 = vmatprep.subr.mxu0 0.0
    %1223 = vmatpush1.msra.mxu0 0.0
    %1224 = vmatprep.subr.mxu0 0.0
    %1225 = vmatpush1.msra.mxu0 0.0
    %1226 = vmatprep.subr.mxu0 0.0
    %1227 = vmatpush1.msra.mxu0 0.0
    %1228 = vmatprep.subr.mxu0 0.0
    %1229 = vmatpush1.msra.mxu0 0.0
    %1230 = vmatprep.subr.mxu0 0.0
    %1231 = vmatpush1.msra.mxu0 0.0
    %1232 = vmatprep.subr.mxu0 0.0
    %1233 = vmatpush1.msra.mxu0 0.0
    %1234 = vmatprep.subr.mxu0 0.0
    %1235 = vmatpush1.msra.mxu0 0.0
    %1236 = vmatprep.subr.mxu0 0.0
    %1237 = vmatpush1.msra.mxu0 0.0
    %1238 = vmatprep.subr.mxu0 0.0
    %1239 = vmatpush1.msra.mxu0 0.0
    %1240 = vmatprep.subr.mxu0 0.0
    %1241 = vmatpush1.msra.mxu0 0.0
    %1242 = vmatprep.subr.mxu0 0.0
    %1243 = vmatpush1.msra.mxu0 0.0
    %1244 = vmatprep.subr.mxu0 0.0
    %1245 = vmatpush1.msra.mxu0 0.0
    %1246 = vmatprep.subr.mxu0 0.0
    %1247 = vmatpush1.msra.mxu0 0.0
    %1248 = vmatprep.subr.mxu0 0.0
    %1249 = vmatpush1.msra.mxu0 0.0
    %1250 = vmatprep.subr.mxu0 0.0
    %1251 = vmatpush1.msra.mxu0 %v1215
    %1252 = vmatprep.subr.mxu0 0.0
    %1253 = vmatpush2.msra.mxu0 0.0
    %1254 = vmatprep.subr.mxu0 0.0
    %1255 = vmatpush2.msra.mxu0 0.0
    %1256 = vmatprep.subr.mxu0 0.0
    %1257 = vmatpush2.msra.mxu0 0.0
    %1258 = vmatprep.subr.mxu0 0.0
    %1259 = vmatpush2.msra.mxu0 0.0
    %1260 = vmatprep.subr.mxu0 0.0
    %1261 = vmatpush2.msra.mxu0 0.0
    %1262 = vmatprep.subr.mxu0 0.0
    %1263 = vmatpush2.msra.mxu0 0.0
    %1264 = vmatprep.subr.mxu0 0.0
    %1265 = vmatpush2.msra.mxu0 0.0
    %1266 = vmatprep.subr.mxu0 0.0
    %1267 = vmatpush2.msra.mxu0 0.0
    %1268 = vmatprep.subr.mxu0 0.0
    %1269 = vmatpush2.msra.mxu0 0.0
    %1270 = vmatprep.subr.mxu0 0.0
    %1271 = vmatpush2.msra.mxu0 0.0
    %1272 = vmatprep.subr.mxu0 0.0
    %1273 = vmatpush2.msra.mxu0 0.0
    %1274 = vmatprep.subr.mxu0 0.0
    %1275 = vmatpush2.msra.mxu0 0.0
    %1276 = vmatprep.subr.mxu0 0.0
    %1277 = vmatpush2.msra.mxu0 0.0
    %1278 = vmatprep.subr.mxu0 0.0
    %1279 = vmatpush2.msra.mxu0 0.0
    %1280 = vmatprep.subr.mxu0 0.0
    %1281 = vmatpush2.msra.mxu0 0.0
    %1282 = vmatprep.subr.mxu0 0.0
    %1283 = vmatpush2.msra.mxu0 0.0
    %1284 = vmatprep.mubr.f32.mxu0 0.0
    %1285 = vmatmul.mubr.f32.gmra.mxu0 %v1218
    %v1286 = vpop.f32.mrf.mxu0
    %v1287 = vadd.f32 0.0, %v1286
    %v1288 = vpop.f32.mrf.mxu0
    %1289 = vdwg.mxu0
    %1290 = vrot.lane.b32.xlu0 %v140, 120
    %v1291 = vpop.permute.xlu0 %1290
    %1292 = vrot.lane.b32.xlu0 %v140, 88
    %v1293 = vpop.permute.xlu0 %1292
    %v1294 = vsel %vm147, %v1291, 0
    %v1296 = vsel %vm147, %v1293, 0
    %1298 = vmatprep.subr.mxu0 0.0
    %1299 = vmatpush1.xpose.msra.mxu0 0.0
    %1300 = vmatprep.subr.mxu0 0.0
    %1301 = vmatpush1.xpose.msra.mxu0 0.0
    %1302 = vmatprep.subr.mxu0 0.0
    %1303 = vmatpush1.xpose.msra.mxu0 0.0
    %1304 = vmatprep.subr.mxu0 0.0
    %1305 = vmatpush1.xpose.msra.mxu0 0.0
    %1306 = vmatprep.subr.mxu0 0.0
    %1307 = vmatpush1.xpose.msra.mxu0 0.0
    %1308 = vmatprep.subr.mxu0 0.0
    %1309 = vmatpush1.xpose.msra.mxu0 0.0
    %1310 = vmatprep.subr.mxu0 0.0
    %1311 = vmatpush1.xpose.msra.mxu0 0.0
    %1312 = vmatprep.subr.mxu0 0.0
    %1313 = vmatpush1.xpose.msra.mxu0 0.0
    %1314 = vmatprep.subr.mxu0 0.0
    %1315 = vmatpush1.xpose.msra.mxu0 0.0
    %1316 = vmatprep.subr.mxu0 0.0
    %1317 = vmatpush1.xpose.msra.mxu0 0.0
    %1318 = vmatprep.subr.mxu0 0.0
    %1319 = vmatpush1.xpose.msra.mxu0 0.0
    %1320 = vmatprep.subr.mxu0 0.0
    %1321 = vmatpush1.xpose.msra.mxu0 0.0
    %1322 = vmatprep.subr.mxu0 0.0
    %1323 = vmatpush1.xpose.msra.mxu0 0.0
    %1324 = vmatprep.subr.mxu0 0.0
    %1325 = vmatpush1.xpose.msra.mxu0 0.0
    %1326 = vmatprep.subr.mxu0 0.0
    %1327 = vmatpush1.xpose.msra.mxu0 0.0
    %1328 = vmatprep.subr.mxu0 0.0
    %1329 = vmatpush1.xpose.msra.mxu0 %v1296
    %1330 = vmatprep.subr.mxu0 0.0
    %1331 = vmatpush2.xpose.msra.mxu0 0.0
    %1332 = vmatprep.subr.mxu0 0.0
    %1333 = vmatpush2.xpose.msra.mxu0 0.0
    %1334 = vmatprep.subr.mxu0 0.0
    %1335 = vmatpush2.xpose.msra.mxu0 0.0
    %1336 = vmatprep.subr.mxu0 0.0
    %1337 = vmatpush2.xpose.msra.mxu0 0.0
    %1338 = vmatprep.subr.mxu0 0.0
    %1339 = vmatpush2.xpose.msra.mxu0 0.0
    %1340 = vmatprep.subr.mxu0 0.0
    %1341 = vmatpush2.xpose.msra.mxu0 0.0
    %1342 = vmatprep.subr.mxu0 0.0
    %1343 = vmatpush2.xpose.msra.mxu0 0.0
    %1344 = vmatprep.subr.mxu0 0.0
    %1345 = vmatpush2.xpose.msra.mxu0 0.0
    %1346 = vmatprep.subr.mxu0 0.0
    %1347 = vmatpush2.xpose.msra.mxu0 0.0
    %1348 = vmatprep.subr.mxu0 0.0
    %1349 = vmatpush2.xpose.msra.mxu0 0.0
    %1350 = vmatprep.subr.mxu0 0.0
    %1351 = vmatpush2.xpose.msra.mxu0 0.0
    %1352 = vmatprep.subr.mxu0 0.0
    %1353 = vmatpush2.xpose.msra.mxu0 0.0
    %1354 = vmatprep.subr.mxu0 0.0
    %1355 = vmatpush2.xpose.msra.mxu0 0.0
    %1356 = vmatprep.subr.mxu0 0.0
    %1357 = vmatpush2.xpose.msra.mxu0 0.0
    %1358 = vmatprep.subr.mxu0 0.0
    %1359 = vmatpush2.xpose.msra.mxu0 0.0
    %1360 = vmatprep.subr.mxu0 0.0
    %1361 = vmatpush2.xpose.msra.mxu0 0.0
    %1362 = vmatprep.mubr.f32.mxu0 0.0
    %1363 = vmatmul.mubr.f32.gmra.mxu0 %v1294
    %v1364 = vpop.f32.mrf.mxu0
    %v1365 = vadd.f32 0.0, %v1364
    %v1366 = vpop.f32.mrf.mxu0
    %1367 = vdwg.mxu0
    %v1368 = vmul.f32 %v1365, 0.35355338
    %v1369 = vadd.f32 %v1368, %v1200
    %v1370 = vsel %vm147, %v1369, -inf
    %1371 = vmax.xlane.f32.xlu0 %v1370
    %v1372 = vpop.xlane.xlu0 %1371
    %v1373 = vsub.f32 %v1369, %v1372
    %v1374 = vmul.f32 %v1373, 1.442695
    %v1375 = vpow.pop %v1374
    %v1376 = vsel %vm147, %v1375, 0.0
    %1377 = vadd.xlane.f32.xlu0 %v1376
    %v1378 = vpop.xlane.xlu0 %1377
    %v1379 = vrcp.pop %v1378
    %v1380 = vmul.f32 %v1375, %v1379
    %1381 = vrot.lane.b32.xlu0 %v140, 56
    %v1382 = vpop.permute.xlu0 %1381
    %v1385 = vsel %vm147, %v1380, 0
    %1387 = vmatprep.subr.mxu0 0.0
    %1388 = vmatpush1.msra.mxu0 0.0
    %1389 = vmatprep.subr.mxu0 0.0
    %1390 = vmatpush1.msra.mxu0 0.0
    %1391 = vmatprep.subr.mxu0 0.0
    %1392 = vmatpush1.msra.mxu0 0.0
    %1393 = vmatprep.subr.mxu0 0.0
    %1394 = vmatpush1.msra.mxu0 0.0
    %1395 = vmatprep.subr.mxu0 0.0
    %1396 = vmatpush1.msra.mxu0 0.0
    %1397 = vmatprep.subr.mxu0 0.0
    %1398 = vmatpush1.msra.mxu0 0.0
    %1399 = vmatprep.subr.mxu0 0.0
    %1400 = vmatpush1.msra.mxu0 0.0
    %1401 = vmatprep.subr.mxu0 0.0
    %1402 = vmatpush1.msra.mxu0 0.0
    %1403 = vmatprep.subr.mxu0 0.0
    %1404 = vmatpush1.msra.mxu0 0.0
    %1405 = vmatprep.subr.mxu0 0.0
    %1406 = vmatpush1.msra.mxu0 0.0
    %1407 = vmatprep.subr.mxu0 0.0
    %1408 = vmatpush1.msra.mxu0 0.0
    %1409 = vmatprep.subr.mxu0 0.0
    %1410 = vmatpush1.msra.mxu0 0.0
    %1411 = vmatprep.subr.mxu0 0.0
    %1412 = vmatpush1.msra.mxu0 0.0
    %1413 = vmatprep.subr.mxu0 0.0
    %1414 = vmatpush1.msra.mxu0 0.0
    %1415 = vmatprep.subr.mxu0 0.0
    %1416 = vmatpush1.msra.mxu0 0.0
    %1417 = vmatprep.subr.mxu0 0.0
    %1418 = vmatpush1.msra.mxu0 %v1382
    %1419 = vmatprep.subr.mxu0 0.0
    %1420 = vmatpush2.msra.mxu0 0.0
    %1421 = vmatprep.subr.mxu0 0.0
    %1422 = vmatpush2.msra.mxu0 0.0
    %1423 = vmatprep.subr.mxu0 0.0
    %1424 = vmatpush2.msra.mxu0 0.0
    %1425 = vmatprep.subr.mxu0 0.0
    %1426 = vmatpush2.msra.mxu0 0.0
    %1427 = vmatprep.subr.mxu0 0.0
    %1428 = vmatpush2.msra.mxu0 0.0
    %1429 = vmatprep.subr.mxu0 0.0
    %1430 = vmatpush2.msra.mxu0 0.0
    %1431 = vmatprep.subr.mxu0 0.0
    %1432 = vmatpush2.msra.mxu0 0.0
    %1433 = vmatprep.subr.mxu0 0.0
    %1434 = vmatpush2.msra.mxu0 0.0
    %1435 = vmatprep.subr.mxu0 0.0
    %1436 = vmatpush2.msra.mxu0 0.0
    %1437 = vmatprep.subr.mxu0 0.0
    %1438 = vmatpush2.msra.mxu0 0.0
    %1439 = vmatprep.subr.mxu0 0.0
    %1440 = vmatpush2.msra.mxu0 0.0
    %1441 = vmatprep.subr.mxu0 0.0
    %1442 = vmatpush2.msra.mxu0 0.0
    %1443 = vmatprep.subr.mxu0 0.0
    %1444 = vmatpush2.msra.mxu0 0.0
    %1445 = vmatprep.subr.mxu0 0.0
    %1446 = vmatpush2.msra.mxu0 0.0
    %1447 = vmatprep.subr.mxu0 0.0
    %1448 = vmatpush2.msra.mxu0 0.0
    %1449 = vmatprep.subr.mxu0 0.0
    %1450 = vmatpush2.msra.mxu0 0.0
    %1451 = vmatprep.mubr.f32.mxu0 0.0
    %1452 = vmatmul.mubr.f32.gmra.mxu0 %v1385
    %v1453 = vpop.f32.mrf.mxu0
    %v1454 = vadd.f32 0.0, %v1453
    %v1455 = vpop.f32.mrf.mxu0
    %1456 = vdwg.mxu0
    %v1458 = vsel %vm147, %v1454, 0
    %1460 = vmatprep.subr.mxu0 0.0
    %1461 = vmatpush1.msra.mxu0 0.0
    %1462 = vmatprep.subr.mxu0 0.0
    %1463 = vmatpush1.msra.mxu0 0.0
    %1464 = vmatprep.subr.mxu0 0.0
    %1465 = vmatpush1.msra.mxu0 0.0
    %1466 = vmatprep.subr.mxu0 0.0
    %1467 = vmatpush1.msra.mxu0 0.0
    %1468 = vmatprep.subr.mxu0 0.0
    %1469 = vmatpush1.msra.mxu0 0.0
    %1470 = vmatprep.subr.mxu0 0.0
    %1471 = vmatpush1.msra.mxu0 0.0
    %1472 = vmatprep.subr.mxu0 0.0
    %1473 = vmatpush1.msra.mxu0 0.0
    %1474 = vmatprep.subr.mxu0 0.0
    %1475 = vmatpush1.msra.mxu0 0.0
    %1476 = vmatprep.subr.mxu0 0.0
    %1477 = vmatpush1.msra.mxu0 0.0
    %1478 = vmatprep.subr.mxu0 0.0
    %1479 = vmatpush1.msra.mxu0 0.0
    %1480 = vmatprep.subr.mxu0 0.0
    %1481 = vmatpush1.msra.mxu0 0.0
    %1482 = vmatprep.subr.mxu0 0.0
    %1483 = vmatpush1.msra.mxu0 0.0
    %1484 = vmatprep.subr.mxu0 0.0
    %1485 = vmatpush1.msra.mxu0 0.0
    %1486 = vmatprep.subr.mxu0 0.0
    %1487 = vmatpush1.msra.mxu0 0.0
    %1488 = vmatprep.subr.mxu0 0.0
    %1489 = vmatpush1.msra.mxu0 0.0
    %1490 = vmatprep.subr.mxu0 0.0
    %1491 = vmatpush1.msra.mxu0 %v485
    %1492 = vmatprep.subr.mxu0 0.0
    %1493 = vmatpush2.msra.mxu0 0.0
    %1494 = vmatprep.subr.mxu0 0.0
    %1495 = vmatpush2.msra.mxu0 0.0
    %1496 = vmatprep.subr.mxu0 0.0
    %1497 = vmatpush2.msra.mxu0 0.0
    %1498 = vmatprep.subr.mxu0 0.0
    %1499 = vmatpush2.msra.mxu0 0.0
    %1500 = vmatprep.subr.mxu0 0.0
    %1501 = vmatpush2.msra.mxu0 0.0
    %1502 = vmatprep.subr.mxu0 0.0
    %1503 = vmatpush2.msra.mxu0 0.0
    %1504 = vmatprep.subr.mxu0 0.0
    %1505 = vmatpush2.msra.mxu0 0.0
    %1506 = vmatprep.subr.mxu0 0.0
    %1507 = vmatpush2.msra.mxu0 0.0
    %1508 = vmatprep.subr.mxu0 0.0
    %1509 = vmatpush2.msra.mxu0 0.0
    %1510 = vmatprep.subr.mxu0 0.0
    %1511 = vmatpush2.msra.mxu0 0.0
    %1512 = vmatprep.subr.mxu0 0.0
    %1513 = vmatpush2.msra.mxu0 0.0
    %1514 = vmatprep.subr.mxu0 0.0
    %1515 = vmatpush2.msra.mxu0 0.0
    %1516 = vmatprep.subr.mxu0 0.0
    %1517 = vmatpush2.msra.mxu0 0.0
    %1518 = vmatprep.subr.mxu0 0.0
    %1519 = vmatpush2.msra.mxu0 0.0
    %1520 = vmatprep.subr.mxu0 0.0
    %1521 = vmatpush2.msra.mxu0 0.0
    %1522 = vmatprep.subr.mxu0 0.0
    %1523 = vmatpush2.msra.mxu0 0.0
    %1524 = vmatprep.mubr.f32.mxu0 0.0
    %1525 = vmatmul.mubr.f32.gmra.mxu0 %v1458
    %v1526 = vpop.f32.mrf.mxu0
    %v1527 = vadd.f32 0.0, %v1526
    %v1528 = vpop.f32.mrf.mxu0
    %1529 = vdwg.mxu0
    %v1531 = vsel %vm147, %v1287, 0
    %1533 = vmatprep.subr.mxu0 0.0
    %1534 = vmatpush1.msra.mxu0 0.0
    %1535 = vmatprep.subr.mxu0 0.0
    %1536 = vmatpush1.msra.mxu0 0.0
    %1537 = vmatprep.subr.mxu0 0.0
    %1538 = vmatpush1.msra.mxu0 0.0
    %1539 = vmatprep.subr.mxu0 0.0
    %1540 = vmatpush1.msra.mxu0 0.0
    %1541 = vmatprep.subr.mxu0 0.0
    %1542 = vmatpush1.msra.mxu0 0.0
    %1543 = vmatprep.subr.mxu0 0.0
    %1544 = vmatpush1.msra.mxu0 0.0
    %1545 = vmatprep.subr.mxu0 0.0
    %1546 = vmatpush1.msra.mxu0 0.0
    %1547 = vmatprep.subr.mxu0 0.0
    %1548 = vmatpush1.msra.mxu0 0.0
    %1549 = vmatprep.subr.mxu0 0.0
    %1550 = vmatpush1.msra.mxu0 0.0
    %1551 = vmatprep.subr.mxu0 0.0
    %1552 = vmatpush1.msra.mxu0 0.0
    %1553 = vmatprep.subr.mxu0 0.0
    %1554 = vmatpush1.msra.mxu0 0.0
    %1555 = vmatprep.subr.mxu0 0.0
    %1556 = vmatpush1.msra.mxu0 0.0
    %1557 = vmatprep.subr.mxu0 0.0
    %1558 = vmatpush1.msra.mxu0 0.0
    %1559 = vmatprep.subr.mxu0 0.0
    %1560 = vmatpush1.msra.mxu0 0.0
    %1561 = vmatprep.subr.mxu0 0.0
    %1562 = vmatpush1.msra.mxu0 0.0
    %1563 = vmatprep.subr.mxu0 0.0
    %1564 = vmatpush1.msra.mxu0 %v317
    %1565 = vmatprep.subr.mxu0 0.0
    %1566 = vmatpush2.msra.mxu0 0.0
    %1567 = vmatprep.subr.mxu0 0.0
    %1568 = vmatpush2.msra.mxu0 0.0
    %1569 = vmatprep.subr.mxu0 0.0
    %1570 = vmatpush2.msra.mxu0 0.0
    %1571 = vmatprep.subr.mxu0 0.0
    %1572 = vmatpush2.msra.mxu0 0.0
    %1573 = vmatprep.subr.mxu0 0.0
    %1574 = vmatpush2.msra.mxu0 0.0
    %1575 = vmatprep.subr.mxu0 0.0
    %1576 = vmatpush2.msra.mxu0 0.0
    %1577 = vmatprep.subr.mxu0 0.0
    %1578 = vmatpush2.msra.mxu0 0.0
    %1579 = vmatprep.subr.mxu0 0.0
    %1580 = vmatpush2.msra.mxu0 0.0
    %1581 = vmatprep.subr.mxu0 0.0
    %1582 = vmatpush2.msra.mxu0 0.0
    %1583 = vmatprep.subr.mxu0 0.0
    %1584 = vmatpush2.msra.mxu0 0.0
    %1585 = vmatprep.subr.mxu0 0.0
    %1586 = vmatpush2.msra.mxu0 0.0
    %1587 = vmatprep.subr.mxu0 0.0
    %1588 = vmatpush2.msra.mxu0 0.0
    %1589 = vmatprep.subr.mxu0 0.0
    %1590 = vmatpush2.msra.mxu0 0.0
    %1591 = vmatprep.subr.mxu0 0.0
    %1592 = vmatpush2.msra.mxu0 0.0
    %1593 = vmatprep.subr.mxu0 0.0
    %1594 = vmatpush2.msra.mxu0 0.0
    %1595 = vmatprep.subr.mxu0 0.0
    %1596 = vmatpush2.msra.mxu0 0.0
    %1597 = vmatprep.mubr.f32.mxu0 0.0
    %1598 = vmatmul.mubr.f32.gmra.mxu0 %v1531
    %v1599 = vpop.f32.mrf.mxu0
    %v1600 = vadd.f32 %v1527, %v1599
    %v1601 = vpop.f32.mrf.mxu0
    %1602 = vdwg.mxu0
    %1603 = vrot.lane.b32.xlu0 %v140, 112
    %v1604 = vpop.permute.xlu0 %1603
    %1605 = vrot.lane.b32.xlu0 %v140, 80
    %v1606 = vpop.permute.xlu0 %1605
    %v1607 = vsel %vm147, %v1604, 0
    %v1609 = vsel %vm147, %v1606, 0
    %1611 = vmatprep.subr.mxu0 0.0
    %1612 = vmatpush1.xpose.msra.mxu0 0.0
    %1613 = vmatprep.subr.mxu0 0.0
    %1614 = vmatpush1.xpose.msra.mxu0 0.0
    %1615 = vmatprep.subr.mxu0 0.0
    %1616 = vmatpush1.xpose.msra.mxu0 0.0
    %1617 = vmatprep.subr.mxu0 0.0
    %1618 = vmatpush1.xpose.msra.mxu0 0.0
    %1619 = vmatprep.subr.mxu0 0.0
    %1620 = vmatpush1.xpose.msra.mxu0 0.0
    %1621 = vmatprep.subr.mxu0 0.0
    %1622 = vmatpush1.xpose.msra.mxu0 0.0
    %1623 = vmatprep.subr.mxu0 0.0
    %1624 = vmatpush1.xpose.msra.mxu0 0.0
    %1625 = vmatprep.subr.mxu0 0.0
    %1626 = vmatpush1.xpose.msra.mxu0 0.0
    %1627 = vmatprep.subr.mxu0 0.0
    %1628 = vmatpush1.xpose.msra.mxu0 0.0
    %1629 = vmatprep.subr.mxu0 0.0
    %1630 = vmatpush1.xpose.msra.mxu0 0.0
    %1631 = vmatprep.subr.mxu0 0.0
    %1632 = vmatpush1.xpose.msra.mxu0 0.0
    %1633 = vmatprep.subr.mxu0 0.0
    %1634 = vmatpush1.xpose.msra.mxu0 0.0
    %1635 = vmatprep.subr.mxu0 0.0
    %1636 = vmatpush1.xpose.msra.mxu0 0.0
    %1637 = vmatprep.subr.mxu0 0.0
    %1638 = vmatpush1.xpose.msra.mxu0 0.0
    %1639 = vmatprep.subr.mxu0 0.0
    %1640 = vmatpush1.xpose.msra.mxu0 0.0
    %1641 = vmatprep.subr.mxu0 0.0
    %1642 = vmatpush1.xpose.msra.mxu0 %v1609
    %1643 = vmatprep.subr.mxu0 0.0
    %1644 = vmatpush2.xpose.msra.mxu0 0.0
    %1645 = vmatprep.subr.mxu0 0.0
    %1646 = vmatpush2.xpose.msra.mxu0 0.0
    %1647 = vmatprep.subr.mxu0 0.0
    %1648 = vmatpush2.xpose.msra.mxu0 0.0
    %1649 = vmatprep.subr.mxu0 0.0
    %1650 = vmatpush2.xpose.msra.mxu0 0.0
    %1651 = vmatprep.subr.mxu0 0.0
    %1652 = vmatpush2.xpose.msra.mxu0 0.0
    %1653 = vmatprep.subr.mxu0 0.0
    %1654 = vmatpush2.xpose.msra.mxu0 0.0
    %1655 = vmatprep.subr.mxu0 0.0
    %1656 = vmatpush2.xpose.msra.mxu0 0.0
    %1657 = vmatprep.subr.mxu0 0.0
    %1658 = vmatpush2.xpose.msra.mxu0 0.0
    %1659 = vmatprep.subr.mxu0 0.0
    %1660 = vmatpush2.xpose.msra.mxu0 0.0
    %1661 = vmatprep.subr.mxu0 0.0
    %1662 = vmatpush2.xpose.msra.mxu0 0.0
    %1663 = vmatprep.subr.mxu0 0.0
    %1664 = vmatpush2.xpose.msra.mxu0 0.0
    %1665 = vmatprep.subr.mxu0 0.0
    %1666 = vmatpush2.xpose.msra.mxu0 0.0
    %1667 = vmatprep.subr.mxu0 0.0
    %1668 = vmatpush2.xpose.msra.mxu0 0.0
    %1669 = vmatprep.subr.mxu0 0.0
    %1670 = vmatpush2.xpose.msra.mxu0 0.0
    %1671 = vmatprep.subr.mxu0 0.0
    %1672 = vmatpush2.xpose.msra.mxu0 0.0
    %1673 = vmatprep.subr.mxu0 0.0
    %1674 = vmatpush2.xpose.msra.mxu0 0.0
    %1675 = vmatprep.mubr.f32.mxu0 0.0
    %1676 = vmatmul.mubr.f32.gmra.mxu0 %v1607
    %v1677 = vpop.f32.mrf.mxu0
    %v1678 = vadd.f32 0.0, %v1677
    %v1679 = vpop.f32.mrf.mxu0
    %1680 = vdwg.mxu0
    %v1681 = vmul.f32 %v1678, 0.35355338
    %v1682 = vadd.f32 %v1681, %v1200
    %v1683 = vsel %vm147, %v1682, -inf
    %1684 = vmax.xlane.f32.xlu0 %v1683
    %v1685 = vpop.xlane.xlu0 %1684
    %v1686 = vsub.f32 %v1682, %v1685
    %v1687 = vmul.f32 %v1686, 1.442695
    %v1688 = vpow.pop %v1687
    %v1689 = vsel %vm147, %v1688, 0.0
    %1690 = vadd.xlane.f32.xlu0 %v1689
    %v1691 = vpop.xlane.xlu0 %1690
    %v1692 = vrcp.pop %v1691
    %v1693 = vmul.f32 %v1688, %v1692
    %1694 = vrot.lane.b32.xlu0 %v140, 48
    %v1695 = vpop.permute.xlu0 %1694
    %v1698 = vsel %vm147, %v1693, 0
    %1700 = vmatprep.subr.mxu0 0.0
    %1701 = vmatpush1.msra.mxu0 0.0
    %1702 = vmatprep.subr.mxu0 0.0
    %1703 = vmatpush1.msra.mxu0 0.0
    %1704 = vmatprep.subr.mxu0 0.0
    %1705 = vmatpush1.msra.mxu0 0.0
    %1706 = vmatprep.subr.mxu0 0.0
    %1707 = vmatpush1.msra.mxu0 0.0
    %1708 = vmatprep.subr.mxu0 0.0
    %1709 = vmatpush1.msra.mxu0 0.0
    %1710 = vmatprep.subr.mxu0 0.0
    %1711 = vmatpush1.msra.mxu0 0.0
    %1712 = vmatprep.subr.mxu0 0.0
    %1713 = vmatpush1.msra.mxu0 0.0
    %1714 = vmatprep.subr.mxu0 0.0
    %1715 = vmatpush1.msra.mxu0 0.0
    %1716 = vmatprep.subr.mxu0 0.0
    %1717 = vmatpush1.msra.mxu0 0.0
    %1718 = vmatprep.subr.mxu0 0.0
    %1719 = vmatpush1.msra.mxu0 0.0
    %1720 = vmatprep.subr.mxu0 0.0
    %1721 = vmatpush1.msra.mxu0 0.0
    %1722 = vmatprep.subr.mxu0 0.0
    %1723 = vmatpush1.msra.mxu0 0.0
    %1724 = vmatprep.subr.mxu0 0.0
    %1725 = vmatpush1.msra.mxu0 0.0
    %1726 = vmatprep.subr.mxu0 0.0
    %1727 = vmatpush1.msra.mxu0 0.0
    %1728 = vmatprep.subr.mxu0 0.0
    %1729 = vmatpush1.msra.mxu0 0.0
    %1730 = vmatprep.subr.mxu0 0.0
    %1731 = vmatpush1.msra.mxu0 %v1695
    %1732 = vmatprep.subr.mxu0 0.0
    %1733 = vmatpush2.msra.mxu0 0.0
    %1734 = vmatprep.subr.mxu0 0.0
    %1735 = vmatpush2.msra.mxu0 0.0
    %1736 = vmatprep.subr.mxu0 0.0
    %1737 = vmatpush2.msra.mxu0 0.0
    %1738 = vmatprep.subr.mxu0 0.0
    %1739 = vmatpush2.msra.mxu0 0.0
    %1740 = vmatprep.subr.mxu0 0.0
    %1741 = vmatpush2.msra.mxu0 0.0
    %1742 = vmatprep.subr.mxu0 0.0
    %1743 = vmatpush2.msra.mxu0 0.0
    %1744 = vmatprep.subr.mxu0 0.0
    %1745 = vmatpush2.msra.mxu0 0.0
    %1746 = vmatprep.subr.mxu0 0.0
    %1747 = vmatpush2.msra.mxu0 0.0
    %1748 = vmatprep.subr.mxu0 0.0
    %1749 = vmatpush2.msra.mxu0 0.0
    %1750 = vmatprep.subr.mxu0 0.0
    %1751 = vmatpush2.msra.mxu0 0.0
    %1752 = vmatprep.subr.mxu0 0.0
    %1753 = vmatpush2.msra.mxu0 0.0
    %1754 = vmatprep.subr.mxu0 0.0
    %1755 = vmatpush2.msra.mxu0 0.0
    %1756 = vmatprep.subr.mxu0 0.0
    %1757 = vmatpush2.msra.mxu0 0.0
    %1758 = vmatprep.subr.mxu0 0.0
    %1759 = vmatpush2.msra.mxu0 0.0
    %1760 = vmatprep.subr.mxu0 0.0
    %1761 = vmatpush2.msra.mxu0 0.0
    %1762 = vmatprep.subr.mxu0 0.0
    %1763 = vmatpush2.msra.mxu0 0.0
    %1764 = vmatprep.mubr.f32.mxu0 0.0
    %1765 = vmatmul.mubr.f32.gmra.mxu0 %v1698
    %v1766 = vpop.f32.mrf.mxu0
    %v1767 = vadd.f32 0.0, %v1766
    %v1768 = vpop.f32.mrf.mxu0
    %1769 = vdwg.mxu0
    %v1771 = vsel %vm147, %v1767, 0
    %1773 = vmatprep.subr.mxu0 0.0
    %1774 = vmatpush1.msra.mxu0 0.0
    %1775 = vmatprep.subr.mxu0 0.0
    %1776 = vmatpush1.msra.mxu0 0.0
    %1777 = vmatprep.subr.mxu0 0.0
    %1778 = vmatpush1.msra.mxu0 0.0
    %1779 = vmatprep.subr.mxu0 0.0
    %1780 = vmatpush1.msra.mxu0 0.0
    %1781 = vmatprep.subr.mxu0 0.0
    %1782 = vmatpush1.msra.mxu0 0.0
    %1783 = vmatprep.subr.mxu0 0.0
    %1784 = vmatpush1.msra.mxu0 0.0
    %1785 = vmatprep.subr.mxu0 0.0
    %1786 = vmatpush1.msra.mxu0 0.0
    %1787 = vmatprep.subr.mxu0 0.0
    %1788 = vmatpush1.msra.mxu0 0.0
    %1789 = vmatprep.subr.mxu0 0.0
    %1790 = vmatpush1.msra.mxu0 0.0
    %1791 = vmatprep.subr.mxu0 0.0
    %1792 = vmatpush1.msra.mxu0 0.0
    %1793 = vmatprep.subr.mxu0 0.0
    %1794 = vmatpush1.msra.mxu0 0.0
    %1795 = vmatprep.subr.mxu0 0.0
    %1796 = vmatpush1.msra.mxu0 0.0
    %1797 = vmatprep.subr.mxu0 0.0
    %1798 = vmatpush1.msra.mxu0 0.0
    %1799 = vmatprep.subr.mxu0 0.0
    %1800 = vmatpush1.msra.mxu0 0.0
    %1801 = vmatprep.subr.mxu0 0.0
    %1802 = vmatpush1.msra.mxu0 0.0
    %1803 = vmatprep.subr.mxu0 0.0
    %1804 = vmatpush1.msra.mxu0 %v799
    %1805 = vmatprep.subr.mxu0 0.0
    %1806 = vmatpush2.msra.mxu0 0.0
    %1807 = vmatprep.subr.mxu0 0.0
    %1808 = vmatpush2.msra.mxu0 0.0
    %1809 = vmatprep.subr.mxu0 0.0
    %1810 = vmatpush2.msra.mxu0 0.0
    %1811 = vmatprep.subr.mxu0 0.0
    %1812 = vmatpush2.msra.mxu0 0.0
    %1813 = vmatprep.subr.mxu0 0.0
    %1814 = vmatpush2.msra.mxu0 0.0
    %1815 = vmatprep.subr.mxu0 0.0
    %1816 = vmatpush2.msra.mxu0 0.0
    %1817 = vmatprep.subr.mxu0 0.0
    %1818 = vmatpush2.msra.mxu0 0.0
    %1819 = vmatprep.subr.mxu0 0.0
    %1820 = vmatpush2.msra.mxu0 0.0
    %1821 = vmatprep.subr.mxu0 0.0
    %1822 = vmatpush2.msra.mxu0 0.0
    %1823 = vmatprep.subr.mxu0 0.0
    %1824 = vmatpush2.msra.mxu0 0.0
    %1825 = vmatprep.subr.mxu0 0.0
    %1826 = vmatpush2.msra.mxu0 0.0
    %1827 = vmatprep.subr.mxu0 0.0
    %1828 = vmatpush2.msra.mxu0 0.0
    %1829 = vmatprep.subr.mxu0 0.0
    %1830 = vmatpush2.msra.mxu0 0.0
    %1831 = vmatprep.subr.mxu0 0.0
    %1832 = vmatpush2.msra.mxu0 0.0
    %1833 = vmatprep.subr.mxu0 0.0
    %1834 = vmatpush2.msra.mxu0 0.0
    %1835 = vmatprep.subr.mxu0 0.0
    %1836 = vmatpush2.msra.mxu0 0.0
    %1837 = vmatprep.mubr.f32.mxu0 0.0
    %1838 = vmatmul.mubr.f32.gmra.mxu0 %v1771
    %v1839 = vpop.f32.mrf.mxu0
    %v1840 = vadd.f32 0.0, %v1839
    %v1841 = vpop.f32.mrf.mxu0
    %1842 = vdwg.mxu0
    %v1843 = vadd.f32 %v1600, %v1840
    %1844 = vrot.lane.b32.xlu0 %v140, 104
    %v1845 = vpop.permute.xlu0 %1844
    %1846 = vrot.lane.b32.xlu0 %v140, 72
    %v1847 = vpop.permute.xlu0 %1846
    %v1848 = vsel %vm147, %v1845, 0
    %v1850 = vsel %vm147, %v1847, 0
    %1852 = vmatprep.subr.mxu0 0.0
    %1853 = vmatpush1.xpose.msra.mxu0 0.0
    %1854 = vmatprep.subr.mxu0 0.0
    %1855 = vmatpush1.xpose.msra.mxu0 0.0
    %1856 = vmatprep.subr.mxu0 0.0
    %1857 = vmatpush1.xpose.msra.mxu0 0.0
    %1858 = vmatprep.subr.mxu0 0.0
    %1859 = vmatpush1.xpose.msra.mxu0 0.0
    %1860 = vmatprep.subr.mxu0 0.0
    %1861 = vmatpush1.xpose.msra.mxu0 0.0
    %1862 = vmatprep.subr.mxu0 0.0
    %1863 = vmatpush1.xpose.msra.mxu0 0.0
    %1864 = vmatprep.subr.mxu0 0.0
    %1865 = vmatpush1.xpose.msra.mxu0 0.0
    %1866 = vmatprep.subr.mxu0 0.0
    %1867 = vmatpush1.xpose.msra.mxu0 0.0
    %1868 = vmatprep.subr.mxu0 0.0
    %1869 = vmatpush1.xpose.msra.mxu0 0.0
    %1870 = vmatprep.subr.mxu0 0.0
    %1871 = vmatpush1.xpose.msra.mxu0 0.0
    %1872 = vmatprep.subr.mxu0 0.0
    %1873 = vmatpush1.xpose.msra.mxu0 0.0
    %1874 = vmatprep.subr.mxu0 0.0
    %1875 = vmatpush1.xpose.msra.mxu0 0.0
    %1876 = vmatprep.subr.mxu0 0.0
    %1877 = vmatpush1.xpose.msra.mxu0 0.0
    %1878 = vmatprep.subr.mxu0 0.0
    %1879 = vmatpush1.xpose.msra.mxu0 0.0
    %1880 = vmatprep.subr.mxu0 0.0
    %1881 = vmatpush1.xpose.msra.mxu0 0.0
    %1882 = vmatprep.subr.mxu0 0.0
    %1883 = vmatpush1.xpose.msra.mxu0 %v1850
    %1884 = vmatprep.subr.mxu0 0.0
    %1885 = vmatpush2.xpose.msra.mxu0 0.0
    %1886 = vmatprep.subr.mxu0 0.0
    %1887 = vmatpush2.xpose.msra.mxu0 0.0
    %1888 = vmatprep.subr.mxu0 0.0
    %1889 = vmatpush2.xpose.msra.mxu0 0.0
    %1890 = vmatprep.subr.mxu0 0.0
    %1891 = vmatpush2.xpose.msra.mxu0 0.0
    %1892 = vmatprep.subr.mxu0 0.0
    %1893 = vmatpush2.xpose.msra.mxu0 0.0
    %1894 = vmatprep.subr.mxu0 0.0
    %1895 = vmatpush2.xpose.msra.mxu0 0.0
    %1896 = vmatprep.subr.mxu0 0.0
    %1897 = vmatpush2.xpose.msra.mxu0 0.0
    %1898 = vmatprep.subr.mxu0 0.0
    %1899 = vmatpush2.xpose.msra.mxu0 0.0
    %1900 = vmatprep.subr.mxu0 0.0
    %1901 = vmatpush2.xpose.msra.mxu0 0.0
    %1902 = vmatprep.subr.mxu0 0.0
    %1903 = vmatpush2.xpose.msra.mxu0 0.0
    %1904 = vmatprep.subr.mxu0 0.0
    %1905 = vmatpush2.xpose.msra.mxu0 0.0
    %1906 = vmatprep.subr.mxu0 0.0
    %1907 = vmatpush2.xpose.msra.mxu0 0.0
    %1908 = vmatprep.subr.mxu0 0.0
    %1909 = vmatpush2.xpose.msra.mxu0 0.0
    %1910 = vmatprep.subr.mxu0 0.0
    %1911 = vmatpush2.xpose.msra.mxu0 0.0
    %1912 = vmatprep.subr.mxu0 0.0
    %1913 = vmatpush2.xpose.msra.mxu0 0.0
    %1914 = vmatprep.subr.mxu0 0.0
    %1915 = vmatpush2.xpose.msra.mxu0 0.0
    %1916 = vmatprep.mubr.f32.mxu0 0.0
    %1917 = vmatmul.mubr.f32.gmra.mxu0 %v1848
    %v1918 = vpop.f32.mrf.mxu0
    %v1919 = vadd.f32 0.0, %v1918
    %v1920 = vpop.f32.mrf.mxu0
    %1921 = vdwg.mxu0
    %v1922 = vmul.f32 %v1919, 0.35355338
    %v1923 = vadd.f32 %v1922, %v1200
    %v1924 = vsel %vm147, %v1923, -inf
    %1925 = vmax.xlane.f32.xlu0 %v1924
    %v1926 = vpop.xlane.xlu0 %1925
    %v1927 = vsub.f32 %v1923, %v1926
    %v1928 = vmul.f32 %v1927, 1.442695
    %v1929 = vpow.pop %v1928
    %v1930 = vsel %vm147, %v1929, 0.0
    %1931 = vadd.xlane.f32.xlu0 %v1930
    %v1932 = vpop.xlane.xlu0 %1931
    %v1933 = vrcp.pop %v1932
    %v1934 = vmul.f32 %v1929, %v1933
    %1935 = vrot.lane.b32.xlu0 %v140, 40
    %v1936 = vpop.permute.xlu0 %1935
    %v1939 = vsel %vm147, %v1934, 0
    %1941 = vmatprep.subr.mxu0 0.0
    %1942 = vmatpush1.msra.mxu0 0.0
    %1943 = vmatprep.subr.mxu0 0.0
    %1944 = vmatpush1.msra.mxu0 0.0
    %1945 = vmatprep.subr.mxu0 0.0
    %1946 = vmatpush1.msra.mxu0 0.0
    %1947 = vmatprep.subr.mxu0 0.0
    %1948 = vmatpush1.msra.mxu0 0.0
    %1949 = vmatprep.subr.mxu0 0.0
    %1950 = vmatpush1.msra.mxu0 0.0
    %1951 = vmatprep.subr.mxu0 0.0
    %1952 = vmatpush1.msra.mxu0 0.0
    %1953 = vmatprep.subr.mxu0 0.0
    %1954 = vmatpush1.msra.mxu0 0.0
    %1955 = vmatprep.subr.mxu0 0.0
    %1956 = vmatpush1.msra.mxu0 0.0
    %1957 = vmatprep.subr.mxu0 0.0
    %1958 = vmatpush1.msra.mxu0 0.0
    %1959 = vmatprep.subr.mxu0 0.0
    %1960 = vmatpush1.msra.mxu0 0.0
    %1961 = vmatprep.subr.mxu0 0.0
    %1962 = vmatpush1.msra.mxu0 0.0
    %1963 = vmatprep.subr.mxu0 0.0
    %1964 = vmatpush1.msra.mxu0 0.0
    %1965 = vmatprep.subr.mxu0 0.0
    %1966 = vmatpush1.msra.mxu0 0.0
    %1967 = vmatprep.subr.mxu0 0.0
    %1968 = vmatpush1.msra.mxu0 0.0
    %1969 = vmatprep.subr.mxu0 0.0
    %1970 = vmatpush1.msra.mxu0 0.0
    %1971 = vmatprep.subr.mxu0 0.0
    %1972 = vmatpush1.msra.mxu0 %v1936
    %1973 = vmatprep.subr.mxu0 0.0
    %1974 = vmatpush2.msra.mxu0 0.0
    %1975 = vmatprep.subr.mxu0 0.0
    %1976 = vmatpush2.msra.mxu0 0.0
    %1977 = vmatprep.subr.mxu0 0.0
    %1978 = vmatpush2.msra.mxu0 0.0
    %1979 = vmatprep.subr.mxu0 0.0
    %1980 = vmatpush2.msra.mxu0 0.0
    %1981 = vmatprep.subr.mxu0 0.0
    %1982 = vmatpush2.msra.mxu0 0.0
    %1983 = vmatprep.subr.mxu0 0.0
    %1984 = vmatpush2.msra.mxu0 0.0
    %1985 = vmatprep.subr.mxu0 0.0
    %1986 = vmatpush2.msra.mxu0 0.0
    %1987 = vmatprep.subr.mxu0 0.0
    %1988 = vmatpush2.msra.mxu0 0.0
    %1989 = vmatprep.subr.mxu0 0.0
    %1990 = vmatpush2.msra.mxu0 0.0
    %1991 = vmatprep.subr.mxu0 0.0
    %1992 = vmatpush2.msra.mxu0 0.0
    %1993 = vmatprep.subr.mxu0 0.0
    %1994 = vmatpush2.msra.mxu0 0.0
    %1995 = vmatprep.subr.mxu0 0.0
    %1996 = vmatpush2.msra.mxu0 0.0
    %1997 = vmatprep.subr.mxu0 0.0
    %1998 = vmatpush2.msra.mxu0 0.0
    %1999 = vmatprep.subr.mxu0 0.0
    %2000 = vmatpush2.msra.mxu0 0.0
    %2001 = vmatprep.subr.mxu0 0.0
    %2002 = vmatpush2.msra.mxu0 0.0
    %2003 = vmatprep.subr.mxu0 0.0
    %2004 = vmatpush2.msra.mxu0 0.0
    %2005 = vmatprep.mubr.f32.mxu0 0.0
    %2006 = vmatmul.mubr.f32.gmra.mxu0 %v1939
    %v2007 = vpop.f32.mrf.mxu0
    %v2008 = vadd.f32 0.0, %v2007
    %v2009 = vpop.f32.mrf.mxu0
    %2010 = vdwg.mxu0
    %v2012 = vsel %vm147, %v2008, 0
    %2014 = vmatprep.subr.mxu0 0.0
    %2015 = vmatpush1.msra.mxu0 0.0
    %2016 = vmatprep.subr.mxu0 0.0
    %2017 = vmatpush1.msra.mxu0 0.0
    %2018 = vmatprep.subr.mxu0 0.0
    %2019 = vmatpush1.msra.mxu0 0.0
    %2020 = vmatprep.subr.mxu0 0.0
    %2021 = vmatpush1.msra.mxu0 0.0
    %2022 = vmatprep.subr.mxu0 0.0
    %2023 = vmatpush1.msra.mxu0 0.0
    %2024 = vmatprep.subr.mxu0 0.0
    %2025 = vmatpush1.msra.mxu0 0.0
    %2026 = vmatprep.subr.mxu0 0.0
    %2027 = vmatpush1.msra.mxu0 0.0
    %2028 = vmatprep.subr.mxu0 0.0
    %2029 = vmatpush1.msra.mxu0 0.0
    %2030 = vmatprep.subr.mxu0 0.0
    %2031 = vmatpush1.msra.mxu0 0.0
    %2032 = vmatprep.subr.mxu0 0.0
    %2033 = vmatpush1.msra.mxu0 0.0
    %2034 = vmatprep.subr.mxu0 0.0
    %2035 = vmatpush1.msra.mxu0 0.0
    %2036 = vmatprep.subr.mxu0 0.0
    %2037 = vmatpush1.msra.mxu0 0.0
    %2038 = vmatprep.subr.mxu0 0.0
    %2039 = vmatpush1.msra.mxu0 0.0
    %2040 = vmatprep.subr.mxu0 0.0
    %2041 = vmatpush1.msra.mxu0 0.0
    %2042 = vmatprep.subr.mxu0 0.0
    %2043 = vmatpush1.msra.mxu0 0.0
    %2044 = vmatprep.subr.mxu0 0.0
    %2045 = vmatpush1.msra.mxu0 %v1041
    %2046 = vmatprep.subr.mxu0 0.0
    %2047 = vmatpush2.msra.mxu0 0.0
    %2048 = vmatprep.subr.mxu0 0.0
    %2049 = vmatpush2.msra.mxu0 0.0
    %2050 = vmatprep.subr.mxu0 0.0
    %2051 = vmatpush2.msra.mxu0 0.0
    %2052 = vmatprep.subr.mxu0 0.0
    %2053 = vmatpush2.msra.mxu0 0.0
    %2054 = vmatprep.subr.mxu0 0.0
    %2055 = vmatpush2.msra.mxu0 0.0
    %2056 = vmatprep.subr.mxu0 0.0
    %2057 = vmatpush2.msra.mxu0 0.0
    %2058 = vmatprep.subr.mxu0 0.0
    %2059 = vmatpush2.msra.mxu0 0.0
    %2060 = vmatprep.subr.mxu0 0.0
    %2061 = vmatpush2.msra.mxu0 0.0
    %2062 = vmatprep.subr.mxu0 0.0
    %2063 = vmatpush2.msra.mxu0 0.0
    %2064 = vmatprep.subr.mxu0 0.0
    %2065 = vmatpush2.msra.mxu0 0.0
    %2066 = vmatprep.subr.mxu0 0.0
    %2067 = vmatpush2.msra.mxu0 0.0
    %2068 = vmatprep.subr.mxu0 0.0
    %2069 = vmatpush2.msra.mxu0 0.0
    %2070 = vmatprep.subr.mxu0 0.0
    %2071 = vmatpush2.msra.mxu0 0.0
    %2072 = vmatprep.subr.mxu0 0.0
    %2073 = vmatpush2.msra.mxu0 0.0
    %2074 = vmatprep.subr.mxu0 0.0
    %2075 = vmatpush2.msra.mxu0 0.0
    %2076 = vmatprep.subr.mxu0 0.0
    %2077 = vmatpush2.msra.mxu0 0.0
    %2078 = vmatprep.mubr.f32.mxu0 0.0
    %2079 = vmatmul.mubr.f32.gmra.mxu0 %v2012
    %v2080 = vpop.f32.mrf.mxu0
    %v2081 = vadd.f32 0.0, %v2080
    %v2082 = vpop.f32.mrf.mxu0
    %2083 = vdwg.mxu0
    %v2084 = vadd.f32 %v1843, %v2081
    %v2085 = vld [vmem:[%s5] sm:$0x1]
    %v2087 = vlaneseq
    %v2088 = vshrl.u32 %v2087, 7
    %v2089 = vsub.s32 0, %v2088
    %v2090 = vrot.slane %v2085, %v2089
    %v2092 = vadd.f32 %v1115, %v2090
    %v2093 = vadd.f32 %v2084, %v2090
    %v2094 = vadd.f32 %v48, %v2092
    %v2095 = vadd.f32 %v49, %v2093
    %v2096 = vld [vmem:[%s6] sm:$0x1]
    %v2097 = vld [vmem:[%s7] sm:$0x1]
    %v2098 = vsel %vm61, %v2094, 0.0
    %2099 = vadd.xlane.f32.xlu0 %v2098
    %v2100 = vpop.xlane.xlu0 %2099
    %v2101 = vsel %vm61, %v2095, 0.0
    %2102 = vadd.xlane.f32.xlu0 %v2101
    %v2103 = vpop.xlane.xlu0 %2102
    %v2104 = vrcp.pop 32.0
    %v2105 = vmul.f32 %v2100, %v2104
    %v2106 = vmul.f32 %v2103, %v2104
    %v2107 = vsub.f32 %v2094, %v2105
    %v2108 = vsub.f32 %v2095, %v2106
    %v2109 = vmul.f32 %v2107, %v2107
    %v2110 = vmul.f32 %v2108, %v2108
    %v2111 = vsel %vm61, %v2109, 0.0
    %2112 = vadd.xlane.f32.xlu0 %v2111
    %v2113 = vpop.xlane.xlu0 %2112
    %v2114 = vsel %vm61, %v2110, 0.0
    %2115 = vadd.xlane.f32.xlu0 %v2114
    %v2116 = vpop.xlane.xlu0 %2115
    %v2117 = vmul.f32 %v2113, %v2104
    %v2118 = vmul.f32 %v2116, %v2104
    %v2119 = vadd.f32 %v2117, 1e-05
    %v2120 = vadd.f32 %v2118, 1e-05
    %v2121 = vrsqrt.pop %v2119
    %v2122 = vrsqrt.pop %v2120
    %v2123 = vmul.f32 %v2107, %v2121
    %v2124 = vmul.f32 %v2108, %v2122
    %v2126 = vlaneseq
    %v2127 = vshrl.u32 %v2126, 7
    %v2128 = vsub.s32 0, %v2127
    %v2129 = vrot.slane %v2096, %v2128
    %v2131 = vmul.f32 %v2123, %v2129
    %v2132 = vmul.f32 %v2124, %v2129
    %v2134 = vlaneseq
    %v2135 = vshrl.u32 %v2134, 7
    %v2136 = vsub.s32 0, %v2135
    %v2137 = vrot.slane %v2097, %v2136
    %v2139 = vadd.f32 %v2131, %v2137
    %v2140 = vadd.f32 %v2132, %v2137
    %v2141 = vld [vmem:[%s8] sm:$0xff]
    %v2142 = vld [vmem:[%s8 + $0x8] sm:$0xff]
    %v2143 = vld [vmem:[%s8 + $0x10] sm:$0xff]
    %v2144 = vld [vmem:[%s8 + $0x18] sm:$0xff]
    %v2145 = vld [vmem:[%s9] sm:$0x1]
    %v2147 = vlaneseq
    %v2148 = vshrl.u32 %v2147, 7
    %v2149 = vsub.s32 0, %v2148
    %v2150 = vrot.slane %v2145, %v2149
    %v2153 = vsel %vm61, %v2139, 0
    %v2156 = vsel %vm61, %v2140, 0
    %2158 = vmatprep.subr.mxu0 0.0
    %2159 = vmatpush1.msra.mxu0 0.0
    %2160 = vmatprep.subr.mxu0 0.0
    %2161 = vmatpush1.msra.mxu0 0.0
    %2162 = vmatprep.subr.mxu0 0.0
    %2163 = vmatpush1.msra.mxu0 0.0
    %2164 = vmatprep.subr.mxu0 0.0
    %2165 = vmatpush1.msra.mxu0 0.0
    %2166 = vmatprep.subr.mxu0 0.0
    %2167 = vmatpush1.msra.mxu0 0.0
    %2168 = vmatprep.subr.mxu0 0.0
    %2169 = vmatpush1.msra.mxu0 0.0
    %2170 = vmatprep.subr.mxu0 0.0
    %2171 = vmatpush1.msra.mxu0 0.0
    %2172 = vmatprep.subr.mxu0 0.0
    %2173 = vmatpush1.msra.mxu0 0.0
    %2174 = vmatprep.subr.mxu0 0.0
    %2175 = vmatpush1.msra.mxu0 0.0
    %2176 = vmatprep.subr.mxu0 0.0
    %2177 = vmatpush1.msra.mxu0 0.0
    %2178 = vmatprep.subr.mxu0 0.0
    %2179 = vmatpush1.msra.mxu0 0.0
    %2180 = vmatprep.subr.mxu0 0.0
    %2181 = vmatpush1.msra.mxu0 0.0
    %2182 = vmatprep.subr.mxu0 0.0
    %2183 = vmatpush1.msra.mxu0 %v2144
    %2184 = vmatprep.subr.mxu0 0.0
    %2185 = vmatpush1.msra.mxu0 %v2143
    %2186 = vmatprep.subr.mxu0 0.0
    %2187 = vmatpush1.msra.mxu0 %v2142
    %2188 = vmatprep.subr.mxu0 0.0
    %2189 = vmatpush1.msra.mxu0 %v2141
    %2190 = vmatprep.subr.mxu0 0.0
    %2191 = vmatpush2.msra.mxu0 0.0
    %2192 = vmatprep.subr.mxu0 0.0
    %2193 = vmatpush2.msra.mxu0 0.0
    %2194 = vmatprep.subr.mxu0 0.0
    %2195 = vmatpush2.msra.mxu0 0.0
    %2196 = vmatprep.subr.mxu0 0.0
    %2197 = vmatpush2.msra.mxu0 0.0
    %2198 = vmatprep.subr.mxu0 0.0
    %2199 = vmatpush2.msra.mxu0 0.0
    %2200 = vmatprep.subr.mxu0 0.0
    %2201 = vmatpush2.msra.mxu0 0.0
    %2202 = vmatprep.subr.mxu0 0.0
    %2203 = vmatpush2.msra.mxu0 0.0
    %2204 = vmatprep.subr.mxu0 0.0
    %2205 = vmatpush2.msra.mxu0 0.0
    %2206 = vmatprep.subr.mxu0 0.0
    %2207 = vmatpush2.msra.mxu0 0.0
    %2208 = vmatprep.subr.mxu0 0.0
    %2209 = vmatpush2.msra.mxu0 0.0
    %2210 = vmatprep.subr.mxu0 0.0
    %2211 = vmatpush2.msra.mxu0 0.0
    %2212 = vmatprep.subr.mxu0 0.0
    %2213 = vmatpush2.msra.mxu0 0.0
    %2214 = vmatprep.subr.mxu0 0.0
    %2215 = vmatpush2.msra.mxu0 0.0
    %2216 = vmatprep.subr.mxu0 0.0
    %2217 = vmatpush2.msra.mxu0 0.0
    %2218 = vmatprep.subr.mxu0 0.0
    %2219 = vmatpush2.msra.mxu0 0.0
    %2220 = vmatprep.subr.mxu0 0.0
    %2221 = vmatpush2.msra.mxu0 0.0
    %2222 = vmatprep.mubr.f32.mxu0 0.0
    %2223 = vmatmul.mubr.f32.gmra.mxu0 %v2153
    %v2224 = vpop.f32.mrf.mxu0
    %v2225 = vadd.f32 %v2150, %v2224
    %v2226 = vpop.f32.mrf.mxu0
    %2227 = vmatprep.mubr.f32.mxu0 0.0
    %2228 = vmatmul.mubr.f32.gmra.mxu0 %v2156
    %v2229 = vpop.f32.mrf.mxu0
    %v2230 = vadd.f32 %v2150, %v2229
    %v2231 = vpop.f32.mrf.mxu0
    %2232 = vdwg.mxu0
    %v2233 = vmax.f32 %v2225, 0.0
    %v2234 = vmax.f32 %v2230, 0.0
    %v2235 = vld [vmem:[%s10] sm:$0xff]
    %v2236 = vld [vmem:[%s10 + $0x8] sm:$0xff]
    %v2237 = vld [vmem:[%s10 + $0x10] sm:$0xff]
    %v2238 = vld [vmem:[%s10 + $0x18] sm:$0xff]
    %v2239 = vld [vmem:[%s10 + $0x20] sm:$0xff]
    %v2240 = vld [vmem:[%s10 + $0x28] sm:$0xff]
    %v2241 = vld [vmem:[%s10 + $0x30] sm:$0xff]
    %v2242 = vld [vmem:[%s10 + $0x38] sm:$0xff]
    %v2243 = vld [vmem:[%s10 + $0x40] sm:$0xff]
    %v2244 = vld [vmem:[%s10 + $0x48] sm:$0xff]
    %v2245 = vld [vmem:[%s10 + $0x50] sm:$0xff]
    %v2246 = vld [vmem:[%s10 + $0x58] sm:$0xff]
    %v2247 = vld [vmem:[%s10 + $0x60] sm:$0xff]
    %v2248 = vld [vmem:[%s10 + $0x68] sm:$0xff]
    %v2249 = vld [vmem:[%s10 + $0x70] sm:$0xff]
    %v2250 = vld [vmem:[%s10 + $0x78] sm:$0xff]
    %v2251 = vld [vmem:[%s11] sm:$0x1]
    %v2253 = vlaneseq
    %v2254 = vshrl.u32 %v2253, 7
    %v2255 = vsub.s32 0, %v2254
    %v2256 = vrot.slane %v2251, %v2255
    %2258 = vmatprep.subr.mxu0 0.0
    %2259 = vmatpush1.msra.mxu0 %v2250
    %2260 = vmatprep.subr.mxu0 0.0
    %2261 = vmatpush1.msra.mxu0 %v2249
    %2262 = vmatprep.subr.mxu0 0.0
    %2263 = vmatpush1.msra.mxu0 %v2248
    %2264 = vmatprep.subr.mxu0 0.0
    %2265 = vmatpush1.msra.mxu0 %v2247
    %2266 = vmatprep.subr.mxu0 0.0
    %2267 = vmatpush1.msra.mxu0 %v2246
    %2268 = vmatprep.subr.mxu0 0.0
    %2269 = vmatpush1.msra.mxu0 %v2245
    %2270 = vmatprep.subr.mxu0 0.0
    %2271 = vmatpush1.msra.mxu0 %v2244
    %2272 = vmatprep.subr.mxu0 0.0
    %2273 = vmatpush1.msra.mxu0 %v2243
    %2274 = vmatprep.subr.mxu0 0.0
    %2275 = vmatpush1.msra.mxu0 %v2242
    %2276 = vmatprep.subr.mxu0 0.0
    %2277 = vmatpush1.msra.mxu0 %v2241
    %2278 = vmatprep.subr.mxu0 0.0
    %2279 = vmatpush1.msra.mxu0 %v2240
    %2280 = vmatprep.subr.mxu0 0.0
    %2281 = vmatpush1.msra.mxu0 %v2239
    %2282 = vmatprep.subr.mxu0 0.0
    %2283 = vmatpush1.msra.mxu0 %v2238
    %2284 = vmatprep.subr.mxu0 0.0
    %2285 = vmatpush1.msra.mxu0 %v2237
    %2286 = vmatprep.subr.mxu0 0.0
    %2287 = vmatpush1.msra.mxu0 %v2236
    %2288 = vmatprep.subr.mxu0 0.0
    %2289 = vmatpush1.msra.mxu0 %v2235
    %2290 = vmatprep.subr.mxu0 0.0
    %2291 = vmatpush2.msra.mxu0 0.0
    %2292 = vmatprep.subr.mxu0 0.0
    %2293 = vmatpush2.msra.mxu0 0.0
    %2294 = vmatprep.subr.mxu0 0.0
    %2295 = vmatpush2.msra.mxu0 0.0
    %2296 = vmatprep.subr.mxu0 0.0
    %2297 = vmatpush2.msra.mxu0 0.0
    %2298 = vmatprep.subr.mxu0 0.0
    %2299 = vmatpush2.msra.mxu0 0.0
    %2300 = vmatprep.subr.mxu0 0.0
    %2301 = vmatpush2.msra.mxu0 0.0
    %2302 = vmatprep.subr.mxu0 0.0
    %2303 = vmatpush2.msra.mxu0 0.0
    %2304 = vmatprep.subr.mxu0 0.0
    %2305 = vmatpush2.msra.mxu0 0.0
    %2306 = vmatprep.subr.mxu0 0.0
    %2307 = vmatpush2.msra.mxu0 0.0
    %2308 = vmatprep.subr.mxu0 0.0
    %2309 = vmatpush2.msra.mxu0 0.0
    %2310 = vmatprep.subr.mxu0 0.0
    %2311 = vmatpush2.msra.mxu0 0.0
    %2312 = vmatprep.subr.mxu0 0.0
    %2313 = vmatpush2.msra.mxu0 0.0
    %2314 = vmatprep.subr.mxu0 0.0
    %2315 = vmatpush2.msra.mxu0 0.0
    %2316 = vmatprep.subr.mxu0 0.0
    %2317 = vmatpush2.msra.mxu0 0.0
    %2318 = vmatprep.subr.mxu0 0.0
    %2319 = vmatpush2.msra.mxu0 0.0
    %2320 = vmatprep.subr.mxu0 0.0
    %2321 = vmatpush2.msra.mxu0 0.0
    %2322 = vmatprep.mubr.f32.mxu0 0.0
    %2323 = vmatmul.mubr.f32.gmra.mxu0 %v2233
    %v2324 = vpop.f32.mrf.mxu0
    %v2325 = vadd.f32 %v2256, %v2324
    %v2326 = vpop.f32.mrf.mxu0
    %2327 = vmatprep.mubr.f32.mxu0 0.0
    %2328 = vmatmul.mubr.f32.gmra.mxu0 %v2234
    %v2329 = vpop.f32.mrf.mxu0
    %v2330 = vadd.f32 %v2256, %v2329
    %v2331 = vpop.f32.mrf.mxu0
    %2332 = vdwg.mxu0
    %v2333 = vadd.f32 %v2139, %v2325
    %v2334 = vadd.f32 %v2140, %v2330
    %v2335 = vld [vmem:[%s12] sm:$0x1]
    %v2336 = vld [vmem:[%s13] sm:$0x1]
    %v2337 = vsel %vm61, %v2333, 0.0
    %2338 = vadd.xlane.f32.xlu0 %v2337
    %v2339 = vpop.xlane.xlu0 %2338
    %v2340 = vsel %vm61, %v2334, 0.0
    %2341 = vadd.xlane.f32.xlu0 %v2340
    %v2342 = vpop.xlane.xlu0 %2341
    %v2343 = vmul.f32 %v2339, %v2104
    %v2344 = vmul.f32 %v2342, %v2104
    %v2345 = vsub.f32 %v2333, %v2343
    %v2346 = vsub.f32 %v2334, %v2344
    %v2347 = vmul.f32 %v2345, %v2345
    %v2348 = vmul.f32 %v2346, %v2346
    %v2349 = vsel %vm61, %v2347, 0.0
    %2350 = vadd.xlane.f32.xlu0 %v2349
    %v2351 = vpop.xlane.xlu0 %2350
    %v2352 = vsel %vm61, %v2348, 0.0
    %2353 = vadd.xlane.f32.xlu0 %v2352
    %v2354 = vpop.xlane.xlu0 %2353
    %v2355 = vmul.f32 %v2351, %v2104
    %v2356 = vmul.f32 %v2354, %v2104
    %v2357 = vadd.f32 %v2355, 1e-05
    %v2358 = vadd.f32 %v2356, 1e-05
    %v2359 = vrsqrt.pop %v2357
    %v2360 = vrsqrt.pop %v2358
    %v2361 = vmul.f32 %v2345, %v2359
    %v2362 = vmul.f32 %v2346, %v2360
    %v2364 = vlaneseq
    %v2365 = vshrl.u32 %v2364, 7
    %v2366 = vsub.s32 0, %v2365
    %v2367 = vrot.slane %v2335, %v2366
    %v2369 = vmul.f32 %v2361, %v2367
    %v2370 = vmul.f32 %v2362, %v2367
    %v2372 = vlaneseq
    %v2373 = vshrl.u32 %v2372, 7
    %v2374 = vsub.s32 0, %v2373
    %v2375 = vrot.slane %v2336, %v2374
    %v2377 = vadd.f32 %v2369, %v2375
    %v2378 = vadd.f32 %v2370, %v2375
    %2379 = vst.msk [vmem:[#allocation2] sm:$0xff] %vm61, %v2377
    %2380 = vst.msk [vmem:[#allocation2 + $0x8] sm:$0xff] %vm61, %v2378
    // Predicated region
    $region58: #{tpu_custom_call.1} parent=1 // pred_check
      _
    $region59: #{tpu_custom_call.1} parent=1 // pred_check_branch
      %2382 = sbr.rel (0) target = $region61
    $region60: #{tpu_custom_call.1} parent=1 // pred_region
      %s2384 = ssub.s32 256, 256
      %2385 = vsyncadd [#allocation3], %s2384
      %s2386 = sshll.u32 [#allocation2], 4
      %s2387 = int_to_ptr.vmem [resolvable:$true] %s2386
      %2392 = dma.vmem_to_hbm [thread:$0]  %s2387, 256, %s14, [#allocation3], 128, 128, 8
    $region61: #{tpu_custom_call.1} parent=1 // pred_fallthru
      _
    // Predicated region
    $region62: #{tpu_custom_call.1} parent=1 // pred_check
      _
    $region63: #{tpu_custom_call.1} parent=1 // pred_check_branch
      %2394 = sbr.rel (0) target = $region65
    $region64: #{tpu_custom_call.1} parent=1 // pred_region
      %2395 = dma.done [#allocation3], 256
    $region65: #{tpu_custom_call.1} parent=1 // pred_fallthru
      _
    %2396 = vsyncpa [#allocation3], 1

</llo_original>
